<compile_context>
chip_gen: v6e
topology: v6e:2x2x1
jax: 0.10.0
libtpu: 0.0.40
codegen_flags: <defaults>
</compile_context>

<pallas_src>
import math

import jax
import jax.numpy as jnp
from jax.experimental import pallas as pl
from jax.experimental.pallas import tpu as pltpu


# ---------------------------------------------------------------------------
# Pallas kernel: ONE residual-coupling flow per grid step (b, f); the (u, v)
# halves are carried across the flow axis in VMEM scratch.
# ---------------------------------------------------------------------------
def _make_flow_kernel(*, num_flows, num_layers, kernel_size, hidden, half, reverse):
    pad = (kernel_size - 1) // 2          # dilation = 1
    K, L, H = kernel_size, num_layers, hidden

    def kernel(z_ref, m_ref, gc_ref,
               pre_w_ref, pre_b_ref,
               in_w_ref, in_b_ref,
               rs_w_ref, rs_b_ref,
               skip_w_ref, skip_b_ref,
               post_w_ref, post_b_ref,
               out_ref,
               u_sc, v_sc, xpad_sc):
        f32, bf16 = jnp.float32, jnp.bfloat16
        fstep = pl.program_id(1)
        T = u_sc.shape[0]

        mask = m_ref[0].astype(f32)                       # (T, 1)
        mask_h = jnp.broadcast_to(mask, (T, H))           # hoisted loop invariants
        mask_half = jnp.broadcast_to(mask, (T, half))

        # ---- state init at the first flow of each batch element ------------
        @pl.when(fstep == 0)
        def _():
            z = z_ref[0].astype(f32)                      # (T, C)
            if reverse:
                u_sc[...] = z[:, half:]
                v_sc[...] = z[:, :half]
            else:
                u_sc[...] = z[:, :half]
                v_sc[...] = z[:, half:]

        # conv halo rows: only ever written here, stay zero across layers/flows
        if pad > 0:
            zrow = jnp.zeros((pad, H), f32)
            xpad_sc[0:pad, :] = zrow
            xpad_sc[pad + T:pad + T + pad, :] = zrow

        u = u_sc[...]                                     # (T, half) f32
        v = v_sc[...]                                     # (T, half) f32

        # pre 1x1 conv (channel flip of odd flows folded into pre_w rows)
        h = (jnp.dot(u.astype(bf16), pre_w_ref[0], preferred_element_type=f32)
             + pre_b_ref[0])
        x = h * mask_h                                    # (T, H) f32

        g_all = gc_ref[0, 0]                              # (L, 2H) f32 (precomputed)

        output = jnp.zeros((T, H), f32)
        for i in range(L):
            # K-tap 'same' conv (dilation 1): store x into the padded scratch once,
            # then accumulate K MXU matmuls over shifted windows (no im2col copies).
            xpad_sc[pad:pad + T, :] = x
            xp = xpad_sc[...]                             # (T + 2p, H) f32
            x_in = jnp.dot(xp[0:T, :].astype(bf16), in_w_ref[0, i * K],
                           preferred_element_type=f32)
            for k in range(1, K):
                x_in = x_in + jnp.dot(xp[k:k + T, :].astype(bf16),
                                      in_w_ref[0, i * K + k],
                                      preferred_element_type=f32)

            # fused_add_tanh_sigmoid_multiply (f32)
            a = x_in + (in_b_ref[0, i] + g_all[i:i + 1, :])
            acts = jnp.tanh(a[:, :H]) * jax.nn.sigmoid(a[:, H:])

            if i < L - 1:
                rs = (jnp.dot(acts, rs_w_ref[0, i], preferred_element_type=f32)
                      + rs_b_ref[0, i])                   # (T, 2H) [res | skip]
                x = (x + rs[:, :H]) * mask_h
                output = output + rs[:, H:]
            else:
                # last WN layer: skip-only matmul on a pre-sliced lane-dense weight
                output = output + (jnp.dot(acts, skip_w_ref[0],
                                           preferred_element_type=f32)
                                   + skip_b_ref[0])

        # post 1x1 conv + affine coupling.  (Row-masking `output` first is redundant
        # for a binary mask since x1_mean is row-masked below.  Flip folded into
        # post_w columns / post_b for odd flows.)
        x1_mean = (jnp.dot(output, post_w_ref[0], preferred_element_type=f32)
                   + post_b_ref[0]) * mask_half
        if reverse:
            x1_new = (v - x1_mean) * mask_half
        else:
            x1_new = x1_mean + v * mask_half

        # Flip between flows = role swap only (channel reversal folded into weights)
        v_sc[...] = u
        u_sc[...] = x1_new

        @pl.when(fstep == num_flows - 1)
        def _():
            if reverse:
                out = jnp.concatenate([u, x1_new], axis=-1)
            else:
                out = jnp.concatenate([x1_new, u], axis=-1)
            out_ref[0] = out.astype(out_ref.dtype)

    return kernel


# ---------------------------------------------------------------------------
# Wrapper: fold the Flips into the weights, stack per-flow params, one pallas_call
# ---------------------------------------------------------------------------
def _prepare_flow_weights(flow_params, *, kernel_size, num_layers, hidden):
    K, L, H = kernel_size, num_layers, hidden
    pre_w, pre_b, cond_w, cond_b = [], [], [], []
    in_w, in_b, rs_w, rs_b = [], [], [], []
    skip_w, skip_b, post_w, post_b = [], [], [], []
    for f, p in enumerate(flow_params):
        flip = (f % 2) == 1   # odd flows see channel-reversed halves (preceding Flip)
        pre_w.append(p["pre_w"][::-1, :] if flip else p["pre_w"])
        pre_b.append(p["pre_b"])
        cond_w.append(p["cond_w"])
        cond_b.append(p["cond_b"])
        in_w.append(p["in_w"].reshape(L * K, H, 2 * H))
        in_b.append(p["in_b"])
        if L > 1:
            rs_w.append(p["rs_w"][:L - 1])
            rs_b.append(p["rs_b"][:L - 1])
        else:  # dummy, never read by the kernel when L == 1
            rs_w.append(jnp.zeros((1, H, 2 * H), jnp.float32))
            rs_b.append(jnp.zeros((1, 1, 2 * H), jnp.float32))
        skip_w.append(p["rs_w"][L - 1][:, H:])            # pre-sliced skip half
        skip_b.append(p["rs_b"][L - 1][:, H:])
        post_w.append(p["post_w"][:, ::-1] if flip else p["post_w"])
        post_b.append(p["post_b"][:, ::-1] if flip else p["post_b"])
    bf16, f32 = jnp.bfloat16, jnp.float32
    return dict(
        # big matmuls (pre / WN in-conv) in bf16; small ones (rs/skip/post) in f32
        pre_w=jnp.stack(pre_w).astype(bf16),  pre_b=jnp.stack(pre_b).astype(f32),
        cond_w=jnp.stack(cond_w).astype(f32), cond_b=jnp.stack(cond_b).astype(f32),
        in_w=jnp.stack(in_w).astype(bf16),    in_b=jnp.stack(in_b).astype(f32),
        rs_w=jnp.stack(rs_w).astype(f32),     rs_b=jnp.stack(rs_b).astype(f32),
        skip_w=jnp.stack(skip_w).astype(f32), skip_b=jnp.stack(skip_b).astype(f32),
        post_w=jnp.stack(post_w).astype(f32), post_b=jnp.stack(post_b).astype(f32),
    )


def flow_forward(z, z_mask, g, flow_params, *, kernel_size, num_layers,
                 reverse=False):
    B, T, C = z.shape
    half = C // 2
    F = len(flow_params)
    assert F % 2 == 0, "flip folding assumes an even number of flows"
    H = flow_params[0]["pre_w"].shape[1]
    K, L = kernel_size, num_layers
    pad = (K - 1) // 2

    w = _prepare_flow_weights(flow_params, kernel_size=K, num_layers=L, hidden=H)

    # Speaker conditioning for ALL flows precomputed outside the kernel
    # (T-independent; an M=1 matmul wastes the MXU in-kernel) -> (B, F, L, 2H)
    g_cond = (jnp.einsum("bus,fsd->bfud", g.astype(jnp.float32), w["cond_w"])
              + w["cond_b"][None]).reshape(B, F, L, 2 * H)

    weights = (w["pre_w"], w["pre_b"], w["in_w"], w["in_b"],
               w["rs_w"], w["rs_b"], w["skip_w"], w["skip_b"],
               w["post_w"], w["post_b"])

    if reverse:
        def flow_ix(f):        # process coupling layers last-to-first
            return F - 1 - f
    else:
        def flow_ix(f):
            return f

    def w_spec(a):
        nd = a.ndim
        return pl.BlockSpec((1,) + a.shape[1:],
                            lambda b, f, _nd=nd: (flow_ix(f),) + (0,) * (_nd - 1))

    kernel = _make_flow_kernel(num_flows=F, num_layers=L, kernel_size=K,
                               hidden=H, half=half, reverse=reverse)

    # explicit VMEM budget: double-buffered blocks + scratch + headroom
    def nbytes(shape, dtype):
        return math.prod(shape) * jnp.dtype(dtype).itemsize

    blk = (2 * nbytes((1, T, C), z.dtype)           # z in (double-buffered)
           + 2 * nbytes((1, T, C), z.dtype)         # out
           + 2 * nbytes((1, T, 1), z_mask.dtype)
           + 2 * nbytes((1, 1, L, 2 * H), jnp.float32)
           + sum(2 * nbytes((1,) + a.shape[1:], a.dtype) for a in weights))
    scratch = (2 * nbytes((T, half), jnp.float32)
               + nbytes((T + 2 * pad, H), jnp.float32))
    vmem_limit = int(min(max(blk + scratch + (16 << 20), 32 << 20), 56 << 20))

    return pl.pallas_call(
        kernel,
        out_shape=jax.ShapeDtypeStruct((B, T, C), z.dtype),
        grid_spec=pltpu.PrefetchScalarGridSpec(
            num_scalar_prefetch=0,
            grid=(B, F),
            in_specs=[pl.BlockSpec((1, T, C), lambda b, f: (b, 0, 0)),
                      pl.BlockSpec((1, T, 1), lambda b, f: (b, 0, 0)),
                      pl.BlockSpec((1, 1, L, 2 * H),
                                   lambda b, f: (b, flow_ix(f), 0, 0))]
                     + [w_spec(a) for a in weights],
            out_specs=pl.BlockSpec((1, T, C), lambda b, f: (b, 0, 0)),
            scratch_shapes=[pltpu.VMEM((T, half), jnp.float32),          # u half
                            pltpu.VMEM((T, half), jnp.float32),          # v half
                            pltpu.VMEM((T + 2 * pad, H), jnp.float32)],  # padded conv in
        ),
        compiler_params=pltpu.CompilerParams(
            dimension_semantics=("parallel", "arbitrary"),
            vmem_limit_bytes=vmem_limit),
    )(z, z_mask, g_cond, *weights)


# ---------------------------------------------------------------------------
# Deterministic parameter init (shapes follow the PyTorch module's __init__)
# ---------------------------------------------------------------------------
def init_coupling_params(key, *, half, hidden, spk, kernel_size, num_layers,
                         scale=0.1):
    ks = jax.random.split(key, 10)

    def rnd(k, shape):
        wgt = jax.random.normal(k, shape, jnp.float32) * scale
        # bf16-representable values: the kernel's bf16 weights then equal the f32
        # reference weights exactly (only activation rounding differs).
        return wgt.astype(jnp.bfloat16).astype(jnp.float32)

    pre_w = rnd(ks[0], (half, hidden))
    pre_b = rnd(ks[1], (1, hidden))
    cond_w = rnd(ks[2], (spk, 2 * hidden * num_layers))
    cond_b = rnd(ks[3], (1, 2 * hidden * num_layers))
    in_w = rnd(ks[4], (num_layers, kernel_size, hidden, 2 * hidden))
    in_b = rnd(ks[5], (num_layers, 1, 2 * hidden))
    # res/skip 1x1 convs; columns [:H] = res, [H:] = skip.  The res half of the
    # last layer is never used (kernel and reference both ignore it).
    rs_w = rnd(ks[6], (num_layers, hidden, 2 * hidden))
    rs_b = rnd(ks[7], (num_layers, 1, 2 * hidden))
    # NOTE: PyTorch zero-initializes `post` (identity coupling at init); use small
    # random values here so the kernel's compute path is exercised.
    post_w = rnd(ks[8], (hidden, half))
    post_b = rnd(ks[9], (1, half))
    return dict(pre_w=pre_w, pre_b=pre_b, cond_w=cond_w, cond_b=cond_b,
                in_w=in_w, in_b=in_b, rs_w=rs_w, rs_b=rs_b,
                post_w=post_w, post_b=post_b)


# ---------------------------------------------------------------------------
# Pure-JAX reference (mirrors the PyTorch math with explicit flips, channels-last)
# ---------------------------------------------------------------------------
def coupling_ref(z, z_mask, g, p, *, kernel_size, num_layers, reverse=False):
    B, T, C = z.shape
    half = C // 2
    hidden = p["pre_w"].shape[1]
    pad = (kernel_size - 1) // 2
    x0, x1 = z[..., :half], z[..., half:]
    mask = z_mask
    h = (jnp.einsum("btc,cd->btd", x0, p["pre_w"]) + p["pre_b"]) * mask
    g_all = jnp.einsum("bos,sd->bod", g, p["cond_w"]) + p["cond_b"]
    output = jnp.zeros((B, T, hidden), jnp.float32)
    x = h
    for i in range(num_layers):
        xp = jnp.pad(x, ((0, 0), (pad, pad), (0, 0)))
        x_in = jnp.zeros((B, T, 2 * hidden), jnp.float32)
        for k in range(kernel_size):
            x_in = x_in + jnp.einsum("btc,cd->btd", xp[:, k:k + T], p["in_w"][i, k])
        x_in = x_in + p["in_b"][i]
        a = x_in + g_all[:, :, i * 2 * hidden:(i + 1) * 2 * hidden]
        acts = jnp.tanh(a[..., :hidden]) * jax.nn.sigmoid(a[..., hidden:])
        if i < num_layers - 1:
            rs = jnp.einsum("btc,cd->btd", acts, p["rs_w"][i]) + p["rs_b"][i]
            x = (x + rs[..., :hidden]) * mask
            output = output + rs[..., hidden:]
        else:
            output = output + (jnp.einsum("btc,cd->btd", acts,
                                          p["rs_w"][i][:, hidden:])
                               + p["rs_b"][i][:, hidden:])
    output = output * mask
    x1_mean = (jnp.einsum("btc,cd->btd", output, p["post_w"]) + p["post_b"]) * mask
    x1 = (x1 - x1_mean) * mask if reverse else x1_mean + x1 * mask
    return jnp.concatenate([x0, x1], axis=-1)


def flow_ref(z, z_mask, g, flow_params, *, kernel_size, num_layers, reverse=False):
    if not reverse:
        for p in flow_params:
            z = coupling_ref(z, z_mask, g, p, kernel_size=kernel_size,
                             num_layers=num_layers, reverse=False)
            z = z[:, :, ::-1]            # Flip: torch.flip(x, [1]) over channels
    else:
        for p in reversed(flow_params):
            z = z[:, :, ::-1]
            z = coupling_ref(z, z_mask, g, p, kernel_size=kernel_size,
                             num_layers=num_layers, reverse=True)
    return z


# ---------------------------------------------------------------------------
if __name__ == "__main__":
    B, T = 2, 16
    content_channels = 32      # C (half = 16)
    internal_channels = 32     # H
    spk_dim = 32               # speaker_embedding_dim
    kernel_size = 5
    num_layers = 2
    num_flows = 2

    key = jax.random.PRNGKey(0)
    kz, kg, kp = jax.random.split(key, 3)
    z = jax.random.normal(kz, (B, T, content_channels), jnp.float32)
    g = jax.random.normal(kg, (B, 1, spk_dim), jnp.float32)
    lengths = jnp.array([T, T - 4])
    z_mask = (jnp.arange(T)[None, :] < lengths[:, None]).astype(jnp.float32)[..., None]
    z = z * z_mask

    flow_params = [
        init_coupling_params(k, half=content_channels // 2,
                             hidden=internal_channels, spk=spk_dim,
                             kernel_size=kernel_size, num_layers=num_layers)
        for k in jax.random.split(kp, num_flows)
    ]

    # forward direction
    out_fwd = jax.block_until_ready(
        flow_forward(z, z_mask, g, flow_params, kernel_size=kernel_size,
                     num_layers=num_layers, reverse=False))
    ref_fwd = flow_ref(z, z_mask, g, flow_params, kernel_size=kernel_size,
                       num_layers=num_layers, reverse=False)
    assert out_fwd.shape == (B, T, content_channels)
    assert bool(jnp.all(jnp.isfinite(out_fwd)))
    assert bool(jnp.allclose(out_fwd, ref_fwd, rtol=2e-2, atol=2e-2)), \
        f"fwd max abs err = {float(jnp.max(jnp.abs(out_fwd - ref_fwd)))}"

    # reverse direction
    out_rev = jax.block_until_ready(
        flow_forward(z, z_mask, g, flow_params, kernel_size=kernel_size,
                     num_layers=num_layers, reverse=True))
    ref_rev = flow_ref(z, z_mask, g, flow_params, kernel_size=kernel_size,
                       num_layers=num_layers, reverse=True)
    assert bool(jnp.all(jnp.isfinite(out_rev)))
    assert bool(jnp.allclose(out_rev, ref_rev, rtol=2e-2, atol=2e-2)), \
        f"rev max abs err = {float(jnp.max(jnp.abs(out_rev - ref_rev)))}"

    # invertibility round trip: reverse(forward(z)) must recover the (masked) input
    z_rt = jax.block_until_ready(
        flow_forward(out_fwd, z_mask, g, flow_params, kernel_size=kernel_size,
                     num_layers=num_layers, reverse=True))
    assert bool(jnp.allclose(z_rt, z, rtol=1e-3, atol=1e-3)), \
        f"round-trip max abs err = {float(jnp.max(jnp.abs(z_rt - z)))}"

    print("KERNEL_OK")
</pallas_src>

<mosaic_0001>
module attributes {stable_mosaic.version = 11 : i64} {
  func.func @kernel(%arg0: i32, %arg1: i32, %arg2: memref<1x16x32xf32, #tpu.memory_space<vmem>>, %arg3: memref<1x16x1xf32, #tpu.memory_space<vmem>>, %arg4: memref<1x1x2x64xf32, #tpu.memory_space<vmem>>, %arg5: memref<1x16x32xbf16, #tpu.memory_space<vmem>>, %arg6: memref<1x1x32xf32, #tpu.memory_space<vmem>>, %arg7: memref<1x10x32x64xbf16, #tpu.memory_space<vmem>>, %arg8: memref<1x2x1x64xf32, #tpu.memory_space<vmem>>, %arg9: memref<1x1x32x64xf32, #tpu.memory_space<vmem>>, %arg10: memref<1x1x1x64xf32, #tpu.memory_space<vmem>>, %arg11: memref<1x32x32xf32, #tpu.memory_space<vmem>>, %arg12: memref<1x1x32xf32, #tpu.memory_space<vmem>>, %arg13: memref<1x32x16xf32, #tpu.memory_space<vmem>>, %arg14: memref<1x1x16xf32, #tpu.memory_space<vmem>>, %arg15: memref<1x16x32xf32, #tpu.memory_space<vmem>>, %arg16: memref<16x16xf32, #tpu.memory_space<vmem>>, %arg17: memref<16x16xf32, #tpu.memory_space<vmem>>, %arg18: memref<20x32xf32, #tpu.memory_space<vmem>>) attributes {dimension_semantics = [#tpu.dimension_semantics<parallel>, #tpu.dimension_semantics<arbitrary>], iteration_bounds = array<i64: 2, 2>, scalar_prefetch = 0 : i64, scratch_operands = 3 : i64, tpu.core_type = #tpu.core_type<tc>, window_params = [{transform_indices = @transform_0, window_bounds = array<i64: 1, 16, 32>}, {transform_indices = @transform_1, window_bounds = array<i64: 1, 16, 1>}, {transform_indices = @transform_2, window_bounds = array<i64: 1, 1, 2, 64>}, {transform_indices = @transform_3, window_bounds = array<i64: 1, 16, 32>}, {transform_indices = @transform_4, window_bounds = array<i64: 1, 1, 32>}, {transform_indices = @transform_5, window_bounds = array<i64: 1, 10, 32, 64>}, {transform_indices = @transform_6, window_bounds = array<i64: 1, 2, 1, 64>}, {transform_indices = @transform_7, window_bounds = array<i64: 1, 1, 32, 64>}, {transform_indices = @transform_8, window_bounds = array<i64: 1, 1, 1, 64>}, {transform_indices = @transform_9, window_bounds = array<i64: 1, 32, 32>}, {transform_indices = @transform_10, window_bounds = array<i64: 1, 1, 32>}, {transform_indices = @transform_11, window_bounds = array<i64: 1, 32, 16>}, {transform_indices = @transform_12, window_bounds = array<i64: 1, 1, 16>}, {transform_indices = @transform_13, window_bounds = array<i64: 1, 16, 32>}]} {
    %c0 = arith.constant 0 : index
    %c0_0 = arith.constant 0 : index
    %c0_1 = arith.constant 0 : index
    %0 = vector.load %arg3[%c0, %c0_0, %c0_1] : memref<1x16x1xf32, #tpu.memory_space<vmem>>, vector<1x16x1xf32>
    %1 = vector.shape_cast %0 : vector<1x16x1xf32> to vector<16x1xf32>
    %2 = vector.shape_cast %1 : vector<16x1xf32> to vector<16x1xf32>
    %3 = vector.broadcast %2 : vector<16x1xf32> to vector<16x32xf32>
    %4 = vector.shape_cast %1 : vector<16x1xf32> to vector<16x1xf32>
    %5 = vector.broadcast %4 : vector<16x1xf32> to vector<16x16xf32>
    %c0_i32 = arith.constant 0 : i32
    %6 = arith.cmpi eq, %arg1, %c0_i32 : i32
    %7 = arith.extui %6 : i1 to i32
    %c0_i32_2 = arith.constant 0 : i32
    %8 = arith.cmpi ne, %7, %c0_i32_2 : i32
    scf.if %8 {
      %c0_109 = arith.constant 0 : index
      %c0_110 = arith.constant 0 : index
      %c0_111 = arith.constant 0 : index
      %153 = vector.load %arg2[%c0_109, %c0_110, %c0_111] : memref<1x16x32xf32, #tpu.memory_space<vmem>>, vector<1x16x32xf32>
      %154 = vector.shape_cast %153 : vector<1x16x32xf32> to vector<16x32xf32>
      %155 = vector.extract_strided_slice %154 {offsets = [0, 0], sizes = [16, 16], strides = [1, 1]} : vector<16x32xf32> to vector<16x16xf32>
      %c0_112 = arith.constant 0 : index
      %c0_113 = arith.constant 0 : index
      %156 = vector.load %arg16[%c0_112, %c0_113] : memref<16x16xf32, #tpu.memory_space<vmem>>, vector<16x16xf32>
      tpu.vector_store %arg16[%c0_112, %c0_113], %155 {strides = array<i32>} : memref<16x16xf32, #tpu.memory_space<vmem>>, vector<16x16xf32>,
      %157 = vector.extract_strided_slice %154 {offsets = [0, 16], sizes = [16, 16], strides = [1, 1]} : vector<16x32xf32> to vector<16x16xf32>
      %c0_114 = arith.constant 0 : index
      %c0_115 = arith.constant 0 : index
      %158 = vector.load %arg17[%c0_114, %c0_115] : memref<16x16xf32, #tpu.memory_space<vmem>>, vector<16x16xf32>
      tpu.vector_store %arg17[%c0_114, %c0_115], %157 {strides = array<i32>} : memref<16x16xf32, #tpu.memory_space<vmem>>, vector<16x16xf32>,
    } else {
    }
    %cst = arith.constant 0.000000e+00 : f32
    %9 = vector.broadcast %cst : f32 to vector<2x32xf32>
    %c0_3 = arith.constant 0 : index
    %c0_4 = arith.constant 0 : index
    %10 = vector.load %arg18[%c0_3, %c0_4] : memref<20x32xf32, #tpu.memory_space<vmem>>, vector<2x32xf32>
    tpu.vector_store %arg18[%c0_3, %c0_4], %9 {strides = array<i32>} : memref<20x32xf32, #tpu.memory_space<vmem>>, vector<2x32xf32>,
    %c18 = arith.constant 18 : index
    %c0_5 = arith.constant 0 : index
    %11 = vector.load %arg18[%c18, %c0_5] : memref<20x32xf32, #tpu.memory_space<vmem>>, vector<2x32xf32>
    tpu.vector_store %arg18[%c18, %c0_5], %9 {strides = array<i32>} : memref<20x32xf32, #tpu.memory_space<vmem>>, vector<2x32xf32>,
    %c0_6 = arith.constant 0 : index
    %c0_7 = arith.constant 0 : index
    %12 = vector.load %arg16[%c0_6, %c0_7] : memref<16x16xf32, #tpu.memory_space<vmem>>, vector<16x16xf32>
    %c0_8 = arith.constant 0 : index
    %c0_9 = arith.constant 0 : index
    %13 = vector.load %arg17[%c0_8, %c0_9] : memref<16x16xf32, #tpu.memory_space<vmem>>, vector<16x16xf32>
    %14 = arith.truncf %12 : vector<16x16xf32> to vector<16x16xbf16>
    %c0_10 = arith.constant 0 : index
    %c0_11 = arith.constant 0 : index
    %c0_12 = arith.constant 0 : index
    %15 = vector.load %arg5[%c0_10, %c0_11, %c0_12] : memref<1x16x32xbf16, #tpu.memory_space<vmem>>, vector<1x16x32xbf16>
    %16 = vector.shape_cast %15 : vector<1x16x32xbf16> to vector<16x32xbf16>
    %cst_13 = arith.constant dense<0.000000e+00> : vector<16x32xf32>
    %17 = tpu.matmul %14, %16, %cst_13 {dimension_numbers = #tpu.dot_dimension_numbers<[1], [0], [0], [1], [0, 0, 1, 1], [], []>} : vector<16x16xbf16>, vector<16x32xbf16>, vector<16x32xf32> -> vector<16x32xf32>
    %c0_14 = arith.constant 0 : index
    %c0_15 = arith.constant 0 : index
    %c0_16 = arith.constant 0 : index
    %18 = vector.load %arg6[%c0_14, %c0_15, %c0_16] : memref<1x1x32xf32, #tpu.memory_space<vmem>>, vector<1x1x32xf32>
    %19 = vector.shape_cast %18 : vector<1x1x32xf32> to vector<1x32xf32>
    %20 = vector.broadcast %19 : vector<1x32xf32> to vector<16x32xf32>
    %21 = arith.addf %17, %20 : vector<16x32xf32>
    %22 = arith.mulf %21, %3 : vector<16x32xf32>
    %c0_17 = arith.constant 0 : index
    %c0_18 = arith.constant 0 : index
    %c0_19 = arith.constant 0 : index
    %c0_20 = arith.constant 0 : index
    %23 = vector.load %arg4[%c0_17, %c0_18, %c0_19, %c0_20] : memref<1x1x2x64xf32, #tpu.memory_space<vmem>>, vector<1x1x2x64xf32>
    %24 = vector.shape_cast %23 : vector<1x1x2x64xf32> to vector<2x64xf32>
    %cst_21 = arith.constant 0.000000e+00 : f32
    %25 = vector.broadcast %cst_21 : f32 to vector<16x32xf32>
    %c2 = arith.constant 2 : index
    %c0_22 = arith.constant 0 : index
    %26 = vector.load %arg18[%c2, %c0_22] : memref<20x32xf32, #tpu.memory_space<vmem>>, vector<16x32xf32>
    tpu.vector_store %arg18[%c2, %c0_22], %22 {strides = array<i32>} : memref<20x32xf32, #tpu.memory_space<vmem>>, vector<16x32xf32>,
    %c0_23 = arith.constant 0 : index
    %c0_24 = arith.constant 0 : index
    %27 = vector.load %arg18[%c0_23, %c0_24] : memref<20x32xf32, #tpu.memory_space<vmem>>, vector<20x32xf32>
    %28 = vector.extract_strided_slice %27 {offsets = [0, 0], sizes = [16, 32], strides = [1, 1]} : vector<20x32xf32> to vector<16x32xf32>
    %29 = arith.truncf %28 : vector<16x32xf32> to vector<16x32xbf16>
    %c0_25 = arith.constant 0 : index
    %c0_26 = arith.constant 0 : index
    %c0_27 = arith.constant 0 : index
    %c0_28 = arith.constant 0 : index
    %30 = vector.load %arg7[%c0_25, %c0_26, %c0_27, %c0_28] : memref<1x10x32x64xbf16, #tpu.memory_space<vmem>>, vector<1x1x32x64xbf16>
    %31 = vector.shape_cast %30 : vector<1x1x32x64xbf16> to vector<32x64xbf16>
    %cst_29 = arith.constant dense<0.000000e+00> : vector<16x64xf32>
    %32 = tpu.matmul %29, %31, %cst_29 {dimension_numbers = #tpu.dot_dimension_numbers<[1], [0], [0], [1], [0, 0, 1, 1], [], []>} : vector<16x32xbf16>, vector<32x64xbf16>, vector<16x64xf32> -> vector<16x64xf32>
    %33 = vector.extract_strided_slice %27 {offsets = [1, 0], sizes = [16, 32], strides = [1, 1]} : vector<20x32xf32> to vector<16x32xf32>
    %34 = arith.truncf %33 : vector<16x32xf32> to vector<16x32xbf16>
    %c0_30 = arith.constant 0 : index
    %c1 = arith.constant 1 : index
    %c0_31 = arith.constant 0 : index
    %c0_32 = arith.constant 0 : index
    %35 = vector.load %arg7[%c0_30, %c1, %c0_31, %c0_32] : memref<1x10x32x64xbf16, #tpu.memory_space<vmem>>, vector<1x1x32x64xbf16>
    %36 = vector.shape_cast %35 : vector<1x1x32x64xbf16> to vector<32x64xbf16>
    %cst_33 = arith.constant dense<0.000000e+00> : vector<16x64xf32>
    %37 = tpu.matmul %34, %36, %cst_33 {dimension_numbers = #tpu.dot_dimension_numbers<[1], [0], [0], [1], [0, 0, 1, 1], [], []>} : vector<16x32xbf16>, vector<32x64xbf16>, vector<16x64xf32> -> vector<16x64xf32>
    %38 = arith.addf %32, %37 : vector<16x64xf32>
    %39 = vector.extract_strided_slice %27 {offsets = [2, 0], sizes = [16, 32], strides = [1, 1]} : vector<20x32xf32> to vector<16x32xf32>
    %40 = arith.truncf %39 : vector<16x32xf32> to vector<16x32xbf16>
    %c0_34 = arith.constant 0 : index
    %c2_35 = arith.constant 2 : index
    %c0_36 = arith.constant 0 : index
    %c0_37 = arith.constant 0 : index
    %41 = vector.load %arg7[%c0_34, %c2_35, %c0_36, %c0_37] : memref<1x10x32x64xbf16, #tpu.memory_space<vmem>>, vector<1x1x32x64xbf16>
    %42 = vector.shape_cast %41 : vector<1x1x32x64xbf16> to vector<32x64xbf16>
    %cst_38 = arith.constant dense<0.000000e+00> : vector<16x64xf32>
    %43 = tpu.matmul %40, %42, %cst_38 {dimension_numbers = #tpu.dot_dimension_numbers<[1], [0], [0], [1], [0, 0, 1, 1], [], []>} : vector<16x32xbf16>, vector<32x64xbf16>, vector<16x64xf32> -> vector<16x64xf32>
    %44 = arith.addf %38, %43 : vector<16x64xf32>
    %45 = vector.extract_strided_slice %27 {offsets = [3, 0], sizes = [16, 32], strides = [1, 1]} : vector<20x32xf32> to vector<16x32xf32>
    %46 = arith.truncf %45 : vector<16x32xf32> to vector<16x32xbf16>
    %c0_39 = arith.constant 0 : index
    %c3 = arith.constant 3 : index
    %c0_40 = arith.constant 0 : index
    %c0_41 = arith.constant 0 : index
    %47 = vector.load %arg7[%c0_39, %c3, %c0_40, %c0_41] : memref<1x10x32x64xbf16, #tpu.memory_space<vmem>>, vector<1x1x32x64xbf16>
    %48 = vector.shape_cast %47 : vector<1x1x32x64xbf16> to vector<32x64xbf16>
    %cst_42 = arith.constant dense<0.000000e+00> : vector<16x64xf32>
    %49 = tpu.matmul %46, %48, %cst_42 {dimension_numbers = #tpu.dot_dimension_numbers<[1], [0], [0], [1], [0, 0, 1, 1], [], []>} : vector<16x32xbf16>, vector<32x64xbf16>, vector<16x64xf32> -> vector<16x64xf32>
    %50 = arith.addf %44, %49 : vector<16x64xf32>
    %51 = vector.extract_strided_slice %27 {offsets = [4, 0], sizes = [16, 32], strides = [1, 1]} : vector<20x32xf32> to vector<16x32xf32>
    %52 = arith.truncf %51 : vector<16x32xf32> to vector<16x32xbf16>
    %c0_43 = arith.constant 0 : index
    %c4 = arith.constant 4 : index
    %c0_44 = arith.constant 0 : index
    %c0_45 = arith.constant 0 : index
    %53 = vector.load %arg7[%c0_43, %c4, %c0_44, %c0_45] : memref<1x10x32x64xbf16, #tpu.memory_space<vmem>>, vector<1x1x32x64xbf16>
    %54 = vector.shape_cast %53 : vector<1x1x32x64xbf16> to vector<32x64xbf16>
    %cst_46 = arith.constant dense<0.000000e+00> : vector<16x64xf32>
    %55 = tpu.matmul %52, %54, %cst_46 {dimension_numbers = #tpu.dot_dimension_numbers<[1], [0], [0], [1], [0, 0, 1, 1], [], []>} : vector<16x32xbf16>, vector<32x64xbf16>, vector<16x64xf32> -> vector<16x64xf32>
    %56 = arith.addf %50, %55 : vector<16x64xf32>
    %c0_47 = arith.constant 0 : index
    %c0_48 = arith.constant 0 : index
    %c0_49 = arith.constant 0 : index
    %c0_50 = arith.constant 0 : index
    %57 = vector.load %arg8[%c0_47, %c0_48, %c0_49, %c0_50] : memref<1x2x1x64xf32, #tpu.memory_space<vmem>>, vector<1x1x1x64xf32>
    %58 = vector.shape_cast %57 : vector<1x1x1x64xf32> to vector<1x64xf32>
    %59 = vector.extract_strided_slice %24 {offsets = [0, 0], sizes = [1, 64], strides = [1, 1]} : vector<2x64xf32> to vector<1x64xf32>
    %60 = arith.addf %58, %59 : vector<1x64xf32>
    %61 = vector.broadcast %60 : vector<1x64xf32> to vector<16x64xf32>
    %62 = arith.addf %56, %61 : vector<16x64xf32>
    %63 = vector.extract_strided_slice %62 {offsets = [0, 0], sizes = [16, 32], strides = [1, 1]} : vector<16x64xf32> to vector<16x32xf32>
    %64 = math.tanh %63 : vector<16x32xf32>
    %65 = vector.extract_strided_slice %62 {offsets = [0, 32], sizes = [16, 32], strides = [1, 1]} : vector<16x64xf32> to vector<16x32xf32>
    %66 = arith.negf %65 : vector<16x32xf32>
    %67 = math.exp %66 : vector<16x32xf32>
    %cst_51 = arith.constant 1.000000e+00 : f32
    %68 = vector.broadcast %cst_51 : f32 to vector<16x32xf32>
    %69 = arith.addf %68, %67 : vector<16x32xf32>
    %70 = arith.divf %68, %69 : vector<16x32xf32>
    %71 = arith.mulf %64, %70 : vector<16x32xf32>
    %c0_52 = arith.constant 0 : index
    %c0_53 = arith.constant 0 : index
    %c0_54 = arith.constant 0 : index
    %c0_55 = arith.constant 0 : index
    %72 = vector.load %arg9[%c0_52, %c0_53, %c0_54, %c0_55] : memref<1x1x32x64xf32, #tpu.memory_space<vmem>>, vector<1x1x32x64xf32>
    %73 = vector.shape_cast %72 : vector<1x1x32x64xf32> to vector<32x64xf32>
    %cst_56 = arith.constant dense<0.000000e+00> : vector<16x64xf32>
    %74 = tpu.matmul %71, %73, %cst_56 {dimension_numbers = #tpu.dot_dimension_numbers<[1], [0], [0], [1], [0, 0, 1, 1], [], []>} : vector<16x32xf32>, vector<32x64xf32>, vector<16x64xf32> -> vector<16x64xf32>
    %c0_57 = arith.constant 0 : index
    %c0_58 = arith.constant 0 : index
    %c0_59 = arith.constant 0 : index
    %c0_60 = arith.constant 0 : index
    %75 = vector.load %arg10[%c0_57, %c0_58, %c0_59, %c0_60] : memref<1x1x1x64xf32, #tpu.memory_space<vmem>>, vector<1x1x1x64xf32>
    %76 = vector.shape_cast %75 : vector<1x1x1x64xf32> to vector<1x64xf32>
    %77 = vector.broadcast %76 : vector<1x64xf32> to vector<16x64xf32>
    %78 = arith.addf %74, %77 : vector<16x64xf32>
    %79 = vector.extract_strided_slice %78 {offsets = [0, 0], sizes = [16, 32], strides = [1, 1]} : vector<16x64xf32> to vector<16x32xf32>
    %80 = arith.addf %22, %79 : vector<16x32xf32>
    %81 = arith.mulf %80, %3 : vector<16x32xf32>
    %82 = vector.extract_strided_slice %78 {offsets = [0, 32], sizes = [16, 32], strides = [1, 1]} : vector<16x64xf32> to vector<16x32xf32>
    %83 = arith.addf %25, %82 : vector<16x32xf32>
    %c2_61 = arith.constant 2 : index
    %c0_62 = arith.constant 0 : index
    %84 = vector.load %arg18[%c2_61, %c0_62] : memref<20x32xf32, #tpu.memory_space<vmem>>, vector<16x32xf32>
    tpu.vector_store %arg18[%c2_61, %c0_62], %81 {strides = array<i32>} : memref<20x32xf32, #tpu.memory_space<vmem>>, vector<16x32xf32>,
    %c0_63 = arith.constant 0 : index
    %c0_64 = arith.constant 0 : index
    %85 = vector.load %arg18[%c0_63, %c0_64] : memref<20x32xf32, #tpu.memory_space<vmem>>, vector<20x32xf32>
    %86 = vector.extract_strided_slice %85 {offsets = [0, 0], sizes = [16, 32], strides = [1, 1]} : vector<20x32xf32> to vector<16x32xf32>
    %87 = arith.truncf %86 : vector<16x32xf32> to vector<16x32xbf16>
    %c0_65 = arith.constant 0 : index
    %c5 = arith.constant 5 : index
    %c0_66 = arith.constant 0 : index
    %c0_67 = arith.constant 0 : index
    %88 = vector.load %arg7[%c0_65, %c5, %c0_66, %c0_67] : memref<1x10x32x64xbf16, #tpu.memory_space<vmem>>, vector<1x1x32x64xbf16>
    %89 = vector.shape_cast %88 : vector<1x1x32x64xbf16> to vector<32x64xbf16>
    %cst_68 = arith.constant dense<0.000000e+00> : vector<16x64xf32>
    %90 = tpu.matmul %87, %89, %cst_68 {dimension_numbers = #tpu.dot_dimension_numbers<[1], [0], [0], [1], [0, 0, 1, 1], [], []>} : vector<16x32xbf16>, vector<32x64xbf16>, vector<16x64xf32> -> vector<16x64xf32>
    %91 = vector.extract_strided_slice %85 {offsets = [1, 0], sizes = [16, 32], strides = [1, 1]} : vector<20x32xf32> to vector<16x32xf32>
    %92 = arith.truncf %91 : vector<16x32xf32> to vector<16x32xbf16>
    %c0_69 = arith.constant 0 : index
    %c6 = arith.constant 6 : index
    %c0_70 = arith.constant 0 : index
    %c0_71 = arith.constant 0 : index
    %93 = vector.load %arg7[%c0_69, %c6, %c0_70, %c0_71] : memref<1x10x32x64xbf16, #tpu.memory_space<vmem>>, vector<1x1x32x64xbf16>
    %94 = vector.shape_cast %93 : vector<1x1x32x64xbf16> to vector<32x64xbf16>
    %cst_72 = arith.constant dense<0.000000e+00> : vector<16x64xf32>
    %95 = tpu.matmul %92, %94, %cst_72 {dimension_numbers = #tpu.dot_dimension_numbers<[1], [0], [0], [1], [0, 0, 1, 1], [], []>} : vector<16x32xbf16>, vector<32x64xbf16>, vector<16x64xf32> -> vector<16x64xf32>
    %96 = arith.addf %90, %95 : vector<16x64xf32>
    %97 = vector.extract_strided_slice %85 {offsets = [2, 0], sizes = [16, 32], strides = [1, 1]} : vector<20x32xf32> to vector<16x32xf32>
    %98 = arith.truncf %97 : vector<16x32xf32> to vector<16x32xbf16>
    %c0_73 = arith.constant 0 : index
    %c7 = arith.constant 7 : index
    %c0_74 = arith.constant 0 : index
    %c0_75 = arith.constant 0 : index
    %99 = vector.load %arg7[%c0_73, %c7, %c0_74, %c0_75] : memref<1x10x32x64xbf16, #tpu.memory_space<vmem>>, vector<1x1x32x64xbf16>
    %100 = vector.shape_cast %99 : vector<1x1x32x64xbf16> to vector<32x64xbf16>
    %cst_76 = arith.constant dense<0.000000e+00> : vector<16x64xf32>
    %101 = tpu.matmul %98, %100, %cst_76 {dimension_numbers = #tpu.dot_dimension_numbers<[1], [0], [0], [1], [0, 0, 1, 1], [], []>} : vector<16x32xbf16>, vector<32x64xbf16>, vector<16x64xf32> -> vector<16x64xf32>
    %102 = arith.addf %96, %101 : vector<16x64xf32>
    %103 = vector.extract_strided_slice %85 {offsets = [3, 0], sizes = [16, 32], strides = [1, 1]} : vector<20x32xf32> to vector<16x32xf32>
    %104 = arith.truncf %103 : vector<16x32xf32> to vector<16x32xbf16>
    %c0_77 = arith.constant 0 : index
    %c8 = arith.constant 8 : index
    %c0_78 = arith.constant 0 : index
    %c0_79 = arith.constant 0 : index
    %105 = vector.load %arg7[%c0_77, %c8, %c0_78, %c0_79] : memref<1x10x32x64xbf16, #tpu.memory_space<vmem>>, vector<1x1x32x64xbf16>
    %106 = vector.shape_cast %105 : vector<1x1x32x64xbf16> to vector<32x64xbf16>
    %cst_80 = arith.constant dense<0.000000e+00> : vector<16x64xf32>
    %107 = tpu.matmul %104, %106, %cst_80 {dimension_numbers = #tpu.dot_dimension_numbers<[1], [0], [0], [1], [0, 0, 1, 1], [], []>} : vector<16x32xbf16>, vector<32x64xbf16>, vector<16x64xf32> -> vector<16x64xf32>
    %108 = arith.addf %102, %107 : vector<16x64xf32>
    %109 = vector.extract_strided_slice %85 {offsets = [4, 0], sizes = [16, 32], strides = [1, 1]} : vector<20x32xf32> to vector<16x32xf32>
    %110 = arith.truncf %109 : vector<16x32xf32> to vector<16x32xbf16>
    %c0_81 = arith.constant 0 : index
    %c9 = arith.constant 9 : index
    %c0_82 = arith.constant 0 : index
    %c0_83 = arith.constant 0 : index
    %111 = vector.load %arg7[%c0_81, %c9, %c0_82, %c0_83] : memref<1x10x32x64xbf16, #tpu.memory_space<vmem>>, vector<1x1x32x64xbf16>
    %112 = vector.shape_cast %111 : vector<1x1x32x64xbf16> to vector<32x64xbf16>
    %cst_84 = arith.constant dense<0.000000e+00> : vector<16x64xf32>
    %113 = tpu.matmul %110, %112, %cst_84 {dimension_numbers = #tpu.dot_dimension_numbers<[1], [0], [0], [1], [0, 0, 1, 1], [], []>} : vector<16x32xbf16>, vector<32x64xbf16>, vector<16x64xf32> -> vector<16x64xf32>
    %114 = arith.addf %108, %113 : vector<16x64xf32>
    %c0_85 = arith.constant 0 : index
    %c1_86 = arith.constant 1 : index
    %c0_87 = arith.constant 0 : index
    %c0_88 = arith.constant 0 : index
    %115 = vector.load %arg8[%c0_85, %c1_86, %c0_87, %c0_88] : memref<1x2x1x64xf32, #tpu.memory_space<vmem>>, vector<1x1x1x64xf32>
    %116 = vector.shape_cast %115 : vector<1x1x1x64xf32> to vector<1x64xf32>
    %117 = vector.extract_strided_slice %24 {offsets = [1, 0], sizes = [1, 64], strides = [1, 1]} : vector<2x64xf32> to vector<1x64xf32>
    %118 = arith.addf %116, %117 : vector<1x64xf32>
    %119 = vector.broadcast %118 : vector<1x64xf32> to vector<16x64xf32>
    %120 = arith.addf %114, %119 : vector<16x64xf32>
    %121 = vector.extract_strided_slice %120 {offsets = [0, 0], sizes = [16, 32], strides = [1, 1]} : vector<16x64xf32> to vector<16x32xf32>
    %122 = math.tanh %121 : vector<16x32xf32>
    %123 = vector.extract_strided_slice %120 {offsets = [0, 32], sizes = [16, 32], strides = [1, 1]} : vector<16x64xf32> to vector<16x32xf32>
    %124 = arith.negf %123 : vector<16x32xf32>
    %125 = math.exp %124 : vector<16x32xf32>
    %cst_89 = arith.constant 1.000000e+00 : f32
    %126 = vector.broadcast %cst_89 : f32 to vector<16x32xf32>
    %127 = arith.addf %126, %125 : vector<16x32xf32>
    %128 = arith.divf %126, %127 : vector<16x32xf32>
    %129 = arith.mulf %122, %128 : vector<16x32xf32>
    %c0_90 = arith.constant 0 : index
    %c0_91 = arith.constant 0 : index
    %c0_92 = arith.constant 0 : index
    %130 = vector.load %arg11[%c0_90, %c0_91, %c0_92] : memref<1x32x32xf32, #tpu.memory_space<vmem>>, vector<1x32x32xf32>
    %131 = vector.shape_cast %130 : vector<1x32x32xf32> to vector<32x32xf32>
    %cst_93 = arith.constant dense<0.000000e+00> : vector<16x32xf32>
    %132 = tpu.matmul %129, %131, %cst_93 {dimension_numbers = #tpu.dot_dimension_numbers<[1], [0], [0], [1], [0, 0, 1, 1], [], []>} : vector<16x32xf32>, vector<32x32xf32>, vector<16x32xf32> -> vector<16x32xf32>
    %c0_94 = arith.constant 0 : index
    %c0_95 = arith.constant 0 : index
    %c0_96 = arith.constant 0 : index
    %133 = vector.load %arg12[%c0_94, %c0_95, %c0_96] : memref<1x1x32xf32, #tpu.memory_space<vmem>>, vector<1x1x32xf32>
    %134 = vector.shape_cast %133 : vector<1x1x32xf32> to vector<1x32xf32>
    %135 = vector.broadcast %134 : vector<1x32xf32> to vector<16x32xf32>
    %136 = arith.addf %132, %135 : vector<16x32xf32>
    %137 = arith.addf %83, %136 : vector<16x32xf32>
    %c0_97 = arith.constant 0 : index
    %c0_98 = arith.constant 0 : index
    %c0_99 = arith.constant 0 : index
    %138 = vector.load %arg13[%c0_97, %c0_98, %c0_99] : memref<1x32x16xf32, #tpu.memory_space<vmem>>, vector<1x32x16xf32>
    %139 = vector.shape_cast %138 : vector<1x32x16xf32> to vector<32x16xf32>
    %cst_100 = arith.constant dense<0.000000e+00> : vector<16x16xf32>
    %140 = tpu.matmul %137, %139, %cst_100 {dimension_numbers = #tpu.dot_dimension_numbers<[1], [0], [0], [1], [0, 0, 1, 1], [], []>} : vector<16x32xf32>, vector<32x16xf32>, vector<16x16xf32> -> vector<16x16xf32>
    %c0_101 = arith.constant 0 : index
    %c0_102 = arith.constant 0 : index
    %c0_103 = arith.constant 0 : index
    %141 = vector.load %arg14[%c0_101, %c0_102, %c0_103] : memref<1x1x16xf32, #tpu.memory_space<vmem>>, vector<1x1x16xf32>
    %142 = vector.shape_cast %141 : vector<1x1x16xf32> to vector<1x16xf32>
    %143 = vector.broadcast %142 : vector<1x16xf32> to vector<16x16xf32>
    %144 = arith.addf %140, %143 : vector<16x16xf32>
    %145 = arith.mulf %144, %5 : vector<16x16xf32>
    %146 = arith.mulf %13, %5 : vector<16x16xf32>
    %147 = arith.addf %145, %146 : vector<16x16xf32>
    %c0_104 = arith.constant 0 : index
    %c0_105 = arith.constant 0 : index
    %148 = vector.load %arg17[%c0_104, %c0_105] : memref<16x16xf32, #tpu.memory_space<vmem>>, vector<16x16xf32>
    tpu.vector_store %arg17[%c0_104, %c0_105], %12 {strides = array<i32>} : memref<16x16xf32, #tpu.memory_space<vmem>>, vector<16x16xf32>,
    %c0_106 = arith.constant 0 : index
    %c0_107 = arith.constant 0 : index
    %149 = vector.load %arg16[%c0_106, %c0_107] : memref<16x16xf32, #tpu.memory_space<vmem>>, vector<16x16xf32>
    tpu.vector_store %arg16[%c0_106, %c0_107], %147 {strides = array<i32>} : memref<16x16xf32, #tpu.memory_space<vmem>>, vector<16x16xf32>,
    %c1_i32 = arith.constant 1 : i32
    %150 = arith.cmpi eq, %arg1, %c1_i32 : i32
    %151 = arith.extui %150 : i1 to i32
    %c0_i32_108 = arith.constant 0 : i32
    %152 = arith.cmpi ne, %151, %c0_i32_108 : i32
    scf.if %152 {
      %153 = tpu.concatenate %147, %12 in 1 : vector<16x16xf32>, vector<16x16xf32> -> vector<16x32xf32>
      %c0_109 = arith.constant 0 : index
      %c0_110 = arith.constant 0 : index
      %c0_111 = arith.constant 0 : index
      %154 = vector.load %arg15[%c0_109, %c0_110, %c0_111] : memref<1x16x32xf32, #tpu.memory_space<vmem>>, vector<1x16x32xf32>
      %155 = vector.shape_cast %154 : vector<1x16x32xf32> to vector<16x32xf32>
      %156 = vector.shape_cast %153 : vector<16x32xf32> to vector<1x16x32xf32>
      tpu.vector_store %arg15[%c0_109, %c0_110, %c0_111], %156 {strides = array<i32>} : memref<1x16x32xf32, #tpu.memory_space<vmem>>, vector<1x16x32xf32>,
    } else {
    }
    return
  }
  func.func @transform_0(%arg0: i32, %arg1: i32) -> (i32, i32, i32) {
    %c0_i32 = arith.constant 0 : i32
    %c0_i32_0 = arith.constant 0 : i32
    %c0_i32_1 = arith.constant 0 : i32
    return %arg0, %c0_i32, %c0_i32_0 : i32, i32, i32
  }
  func.func @transform_1(%arg0: i32, %arg1: i32) -> (i32, i32, i32) {
    %c0_i32 = arith.constant 0 : i32
    %c0_i32_0 = arith.constant 0 : i32
    %c0_i32_1 = arith.constant 0 : i32
    return %arg0, %c0_i32, %c0_i32_0 : i32, i32, i32
  }
  func.func @transform_2(%arg0: i32, %arg1: i32) -> (i32, i32, i32, i32) {
    %c0_i32 = arith.constant 0 : i32
    %c0_i32_0 = arith.constant 0 : i32
    %c0_i32_1 = arith.constant 0 : i32
    return %arg0, %arg1, %c0_i32, %c0_i32_0 : i32, i32, i32, i32
  }
  func.func @transform_3(%arg0: i32, %arg1: i32) -> (i32, i32, i32) {
    %c0_i32 = arith.constant 0 : i32
    %c0_i32_0 = arith.constant 0 : i32
    %c0_i32_1 = arith.constant 0 : i32
    return %arg1, %c0_i32, %c0_i32_0 : i32, i32, i32
  }
  func.func @transform_4(%arg0: i32, %arg1: i32) -> (i32, i32, i32) {
    %c0_i32 = arith.constant 0 : i32
    %c0_i32_0 = arith.constant 0 : i32
    %c0_i32_1 = arith.constant 0 : i32
    return %arg1, %c0_i32, %c0_i32_0 : i32, i32, i32
  }
  func.func @transform_5(%arg0: i32, %arg1: i32) -> (i32, i32, i32, i32) {
    %c0_i32 = arith.constant 0 : i32
    %c0_i32_0 = arith.constant 0 : i32
    %c0_i32_1 = arith.constant 0 : i32
    %c0_i32_2 = arith.constant 0 : i32
    return %arg1, %c0_i32, %c0_i32_0, %c0_i32_1 : i32, i32, i32, i32
  }
  func.func @transform_6(%arg0: i32, %arg1: i32) -> (i32, i32, i32, i32) {
    %c0_i32 = arith.constant 0 : i32
    %c0_i32_0 = arith.constant 0 : i32
    %c0_i32_1 = arith.constant 0 : i32
    %c0_i32_2 = arith.constant 0 : i32
    return %arg1, %c0_i32, %c0_i32_0, %c0_i32_1 : i32, i32, i32, i32
  }
  func.func @transform_7(%arg0: i32, %arg1: i32) -> (i32, i32, i32, i32) {
    %c0_i32 = arith.constant 0 : i32
    %c0_i32_0 = arith.constant 0 : i32
    %c0_i32_1 = arith.constant 0 : i32
    %c0_i32_2 = arith.constant 0 : i32
    return %arg1, %c0_i32, %c0_i32_0, %c0_i32_1 : i32, i32, i32, i32
  }
  func.func @transform_8(%arg0: i32, %arg1: i32) -> (i32, i32, i32, i32) {
    %c0_i32 = arith.constant 0 : i32
    %c0_i32_0 = arith.constant 0 : i32
    %c0_i32_1 = arith.constant 0 : i32
    %c0_i32_2 = arith.constant 0 : i32
    return %arg1, %c0_i32, %c0_i32_0, %c0_i32_1 : i32, i32, i32, i32
  }
  func.func @transform_9(%arg0: i32, %arg1: i32) -> (i32, i32, i32) {
    %c0_i32 = arith.constant 0 : i32
    %c0_i32_0 = arith.constant 0 : i32
    %c0_i32_1 = arith.constant 0 : i32
    return %arg1, %c0_i32, %c0_i32_0 : i32, i32, i32
  }
  func.func @transform_10(%arg0: i32, %arg1: i32) -> (i32, i32, i32) {
    %c0_i32 = arith.constant 0 : i32
    %c0_i32_0 = arith.constant 0 : i32
    %c0_i32_1 = arith.constant 0 : i32
    return %arg1, %c0_i32, %c0_i32_0 : i32, i32, i32
  }
  func.func @transform_11(%arg0: i32, %arg1: i32) -> (i32, i32, i32) {
    %c0_i32 = arith.constant 0 : i32
    %c0_i32_0 = arith.constant 0 : i32
    %c0_i32_1 = arith.constant 0 : i32
    return %arg1, %c0_i32, %c0_i32_0 : i32, i32, i32
  }
  func.func @transform_12(%arg0: i32, %arg1: i32) -> (i32, i32, i32) {
    %c0_i32 = arith.constant 0 : i32
    %c0_i32_0 = arith.constant 0 : i32
    %c0_i32_1 = arith.constant 0 : i32
    return %arg1, %c0_i32, %c0_i32_0 : i32, i32, i32
  }
  func.func @transform_13(%arg0: i32, %arg1: i32) -> (i32, i32, i32) {
    %c0_i32 = arith.constant 0 : i32
    %c0_i32_0 = arith.constant 0 : i32
    %c0_i32_1 = arith.constant 0 : i32
    return %arg0, %c0_i32, %c0_i32_0 : i32, i32, i32
  }
}

</mosaic_0001>

<llo_original>
// kernel: tpu_custom_call.1
$region0: #{tpu_custom_call.1}
  #allocation0 [shape = 'u32[]', space=smem, size = 0x4, offset = 0x4, fixed_abs, tag = 'smem constant byte address 0x4 - core index']
  #allocation1 [shape = 'u32[144,128]{1,0:T(1,128)}', space=vmem, size = 0x12000, scoped, tag = 'internal scratch']
  #allocation2 [shape = 'f32[16,16]{1,0:T(8,128)}', space=vmem, size = 0x2000, scoped, tag = 'scratch operand']
  #allocation3 [shape = 'f32[16,16]{1,0:T(8,128)}', space=vmem, size = 0x2000, scoped, tag = 'scratch operand']
  #allocation4 [shape = 'f32[20,32]{1,0:T(8,128)}', space=vmem, size = 0x3000, scoped, tag = 'scratch operand']
  %s0 = inlined_call_operand.hbm [shape: f32[2,16,32], index: 0, kind: input, shape index: {}]
  %s1 = inlined_call_operand.vmem [shape: f32[2,16,1], index: 1, kind: input, shape index: {}]
  %s2 = inlined_call_operand.hbm [shape: f32[2,2,2,64], index: 2, kind: input, shape index: {}]
  %s3 = inlined_call_operand.hbm [shape: bf16[2,16,32], index: 3, kind: input, shape index: {}]
  %s4 = inlined_call_operand.vmem [shape: f32[2,1,32], index: 4, kind: input, shape index: {}]
  %s5 = inlined_call_operand.hbm [shape: bf16[2,10,32,64], index: 5, kind: input, shape index: {}]
  %s6 = inlined_call_operand.vmem [shape: f32[2,2,1,64], index: 6, kind: input, shape index: {}]
  %s7 = inlined_call_operand.vmem [shape: f32[2,1,32,64], index: 7, kind: input, shape index: {}]
  %s8 = inlined_call_operand.vmem [shape: f32[2,1,1,64], index: 8, kind: input, shape index: {}]
  %s9 = inlined_call_operand.vmem [shape: f32[2,32,32], index: 9, kind: input, shape index: {}]
  %s10 = inlined_call_operand.vmem [shape: f32[2,1,32], index: 10, kind: input, shape index: {}]
  %s11 = inlined_call_operand.vmem [shape: f32[2,32,16], index: 11, kind: input, shape index: {}]
  %s12 = inlined_call_operand.vmem [shape: f32[2,1,16], index: 12, kind: input, shape index: {}]
  %s13 = inlined_call_operand.hbm [shape: f32[2,16,32], index: 13, kind: output, shape index: {}]
  %s14 = sld [smem:[#allocation0]]
  $region109: #{tpu_custom_call.1} parent=0
    _
  %s16 = ssub.s32 1, %s14
  %s17 = scalar_select 0, %s16, %s14
  $region1: #{tpu_custom_call.1} parent=0
    #allocation5 [shape = 'u8[16384]{0}', space=vmem, size = 0x4000, scoped, tag = 'input window, operand 0']
    #allocation6 [shape = 's32[2]{0}', space=sflag, size = 0x8, scoped, tag = 'scoped memory for tpu_custom_call.1']
    #allocation7 [shape = 's32[2]{0}', space=sflag, size = 0x8, scoped, tag = 'scoped memory for tpu_custom_call.1']
    #allocation8 [shape = 'u8[2048]{0}', space=vmem, size = 0x800, scoped, tag = 'input window, operand 2']
    #allocation9 [shape = 's32[2]{0}', space=sflag, size = 0x8, scoped, tag = 'scoped memory for tpu_custom_call.1']
    #allocation10 [shape = 'u8[8192]{0}', space=vmem, size = 0x2000, scoped, tag = 'input window, operand 3']
    #allocation11 [shape = 'u8[163840]{0}', space=vmem, size = 0x28000, scoped, tag = 'input window, operand 5']
    #allocation12 [shape = 's32[2]{0}', space=sflag, size = 0x8, scoped, tag = 'scoped memory for tpu_custom_call.1']
    #allocation13 [shape = 'u8[16384]{0}', space=vmem, size = 0x4000, scoped, tag = 'output window, operand 0']
    %18 = vsyncpa [#allocation6], 0
    %s19 = scalar_lea.sflag [#allocation6], 1
    %20 = vsyncpa %s19, 0
    %21 = vsyncpa [#allocation9], 0
    %s22 = scalar_lea.sflag [#allocation9], 1
    %23 = vsyncpa %s22, 0
    %24 = vsyncpa [#allocation12], 0
    %s25 = scalar_lea.sflag [#allocation12], 1
    %26 = vsyncpa %s25, 0
    %27 = vsyncpa [#allocation7], 0
    %s28 = scalar_lea.sflag [#allocation7], 1
    %29 = vsyncpa %s28, 0
    loop: start=0, step=1, limit=6
    $region2: #{tpu_custom_call.1} parent=1 // loop_pre_header
      _
    $region3: #{tpu_custom_call.1} parent=1 // loop_header
      %s31 = sphi 0, %s35
      %p32 = scmp.ge.s32.totalorder %s31, 6
      %s38 = sphi 0, %s50
      %s39 = sphi 0, %s46
      %s40 = sphi 0, %s38
      %s41 = sphi 0, %s39
      %s42 = sphi 0, %s40
      %s43 = sphi 0, %s41
      %s53 = sphi 0, %s55
      %s56 = sphi 0, %s53
      %s57 = sphi 0, %s56
      %s73 = sphi 0, %s57
      %s79 = sphi 0, %s81
      %s82 = sphi 0, %s79
      %s83 = sphi 0, %s82
      %s99 = sphi 0, %s83
      %s107 = sphi 0, %s109
      %s110 = sphi 0, %s107
      %s111 = sphi 0, %s110
      %s127 = sphi 0, %s111
      %s133 = sphi 0, %s135
      %s136 = sphi 0, %s133
      %s137 = sphi 0, %s136
      %s153 = sphi 0, %s137
      %s159 = sphi 0, %s161
      %s162 = sphi 0, %s159
      %s163 = sphi 0, %s162
      %s179 = sphi 0, %s163
      %s185 = sphi 0, %s187
      %s188 = sphi 0, %s185
      %s189 = sphi 0, %s188
      %s205 = sphi 0, %s189
      %s211 = sphi 0, %s213
      %s214 = sphi 0, %s211
      %s215 = sphi 0, %s214
      %s231 = sphi 0, %s215
      %s237 = sphi 0, %s239
      %s240 = sphi 0, %s237
      %s241 = sphi 0, %s240
      %s257 = sphi 0, %s241
      %s263 = sphi 0, %s265
      %s266 = sphi 0, %s263
      %s267 = sphi 0, %s266
      %s283 = sphi 0, %s267
      %s289 = sphi 0, %s291
      %s292 = sphi 0, %s289
      %s293 = sphi 0, %s292
      %s309 = sphi 0, %s293
      %s315 = sphi 0, %s317
      %s318 = sphi 0, %s315
      %s319 = sphi 0, %s318
      %s335 = sphi 0, %s319
      %s341 = sphi 0, %s343
      %s344 = sphi 0, %s341
      %s345 = sphi 0, %s344
      %s361 = sphi 0, %s345
      %s367 = sphi 0, %s369
      %s370 = sphi 0, %s367
      %s371 = sphi 0, %s370
      %s387 = sphi 0, %s371
      %s393 = sphi 0, %s395
      %s396 = sphi 0, %s393
      %s397 = sphi 0, %s396
      %s413 = sphi 0, %s397
    $region4: #{tpu_custom_call.1} parent=1 // loop_header_branch
      %34 = sbr.rel (%p32) target = $region8
    $region5: #{tpu_custom_call.1} parent=1 // loop_body
      %s36 = ssub.s32 %s31, 1
      %s37 = ssub.s32 %s31, 2
      %s44 = sadd.s32 1, %s39
      %p45 = scmp.ge.s32.totalorder %s44, 2
      %s46 = scalar_select %p45, 0, %s44
      %s47 = sadd.s32 1, %s38
      %s48 = scalar_select %p45, %s47, %s38
      %p49 = scmp.ge.s32.totalorder %s48, 2
      %s50 = scalar_select %p49, 0, %s48
      %s51 = ssub.s32 %s38, %s50
      %p52 = scmp.eq.s32.totalorder %s51, 0
      %s54 = sadd.s32 %s53, 1
      %s55 = scalar_select %p52, %s53, %s54
      %p58 = pneg %p52
      %p59 = scmp.eq.s32.totalorder %s31, 3
      %p60 = por %p58, %p59
      %p61 = scmp.ne.s32.totalorder %s53, %s56
      %p62 = scmp.eq.s32.totalorder %s31, 0
      %p63 = por %p61, %p62
      %p64 = scmp.ne.s32.totalorder %s53, %s56
      %p65 = scmp.eq.s32.totalorder %s36, 3
      %p66 = por %p64, %p65
      %p67 = scmp.ne.s32.totalorder %s56, %s57
      %p68 = scmp.eq.s32.totalorder %s36, 0
      %p69 = por %p67, %p68
      %p70 = scmp.ne.s32.totalorder %s56, %s57
      %p71 = scmp.eq.s32.totalorder %s37, 3
      %p72 = por %p70, %p71
      %p74 = scmp.ne.s32.totalorder %s57, %s73
      %p75 = scmp.eq.s32.totalorder %s37, 0
      %p76 = por %p74, %p75
      %s77 = ssub.s32 %s38, %s50
      %p78 = scmp.eq.s32.totalorder %s77, 0
      %s80 = sadd.s32 %s79, 1
      %s81 = scalar_select %p78, %s79, %s80
      %p84 = pneg %p78
      %p85 = scmp.eq.s32.totalorder %s31, 3
      %p86 = por %p84, %p85
      %p87 = scmp.ne.s32.totalorder %s79, %s82
      %p88 = scmp.eq.s32.totalorder %s31, 0
      %p89 = por %p87, %p88
      %p90 = scmp.ne.s32.totalorder %s79, %s82
      %p91 = scmp.eq.s32.totalorder %s36, 3
      %p92 = por %p90, %p91
      %p93 = scmp.ne.s32.totalorder %s82, %s83
      %p94 = scmp.eq.s32.totalorder %s36, 0
      %p95 = por %p93, %p94
      %p96 = scmp.ne.s32.totalorder %s82, %s83
      %p97 = scmp.eq.s32.totalorder %s37, 3
      %p98 = por %p96, %p97
      %p100 = scmp.ne.s32.totalorder %s83, %s99
      %p101 = scmp.eq.s32.totalorder %s37, 0
      %p102 = por %p100, %p101
      %s103 = ssub.s32 %s38, %s50
      %s104 = ssub.s32 %s39, %s46
      %s105 = sor.u32 %s103, %s104
      %p106 = scmp.eq.s32.totalorder %s105, 0
      %s108 = sadd.s32 %s107, 1
      %s109 = scalar_select %p106, %s107, %s108
      %p112 = pneg %p106
      %p113 = scmp.eq.s32.totalorder %s31, 3
      %p114 = por %p112, %p113
      %p115 = scmp.ne.s32.totalorder %s107, %s110
      %p116 = scmp.eq.s32.totalorder %s31, 0
      %p117 = por %p115, %p116
      %p118 = scmp.ne.s32.totalorder %s107, %s110
      %p119 = scmp.eq.s32.totalorder %s36, 3
      %p120 = por %p118, %p119
      %p121 = scmp.ne.s32.totalorder %s110, %s111
      %p122 = scmp.eq.s32.totalorder %s36, 0
      %p123 = por %p121, %p122
      %p124 = scmp.ne.s32.totalorder %s110, %s111
      %p125 = scmp.eq.s32.totalorder %s37, 3
      %p126 = por %p124, %p125
      %p128 = scmp.ne.s32.totalorder %s111, %s127
      %p129 = scmp.eq.s32.totalorder %s37, 0
      %p130 = por %p128, %p129
      %s131 = ssub.s32 %s39, %s46
      %p132 = scmp.eq.s32.totalorder %s131, 0
      %s134 = sadd.s32 %s133, 1
      %s135 = scalar_select %p132, %s133, %s134
      %p138 = pneg %p132
      %p139 = scmp.eq.s32.totalorder %s31, 3
      %p140 = por %p138, %p139
      %p141 = scmp.ne.s32.totalorder %s133, %s136
      %p142 = scmp.eq.s32.totalorder %s31, 0
      %p143 = por %p141, %p142
      %p144 = scmp.ne.s32.totalorder %s133, %s136
      %p145 = scmp.eq.s32.totalorder %s36, 3
      %p146 = por %p144, %p145
      %p147 = scmp.ne.s32.totalorder %s136, %s137
      %p148 = scmp.eq.s32.totalorder %s36, 0
      %p149 = por %p147, %p148
      %p150 = scmp.ne.s32.totalorder %s136, %s137
      %p151 = scmp.eq.s32.totalorder %s37, 3
      %p152 = por %p150, %p151
      %p154 = scmp.ne.s32.totalorder %s137, %s153
      %p155 = scmp.eq.s32.totalorder %s37, 0
      %p156 = por %p154, %p155
      %s157 = ssub.s32 %s39, %s46
      %p158 = scmp.eq.s32.totalorder %s157, 0
      %s160 = sadd.s32 %s159, 1
      %s161 = scalar_select %p158, %s159, %s160
      %p164 = pneg %p158
      %p165 = scmp.eq.s32.totalorder %s31, 3
      %p166 = por %p164, %p165
      %p167 = scmp.ne.s32.totalorder %s159, %s162
      %p168 = scmp.eq.s32.totalorder %s31, 0
      %p169 = por %p167, %p168
      %p170 = scmp.ne.s32.totalorder %s159, %s162
      %p171 = scmp.eq.s32.totalorder %s36, 3
      %p172 = por %p170, %p171
      %p173 = scmp.ne.s32.totalorder %s162, %s163
      %p174 = scmp.eq.s32.totalorder %s36, 0
      %p175 = por %p173, %p174
      %p176 = scmp.ne.s32.totalorder %s162, %s163
      %p177 = scmp.eq.s32.totalorder %s37, 3
      %p178 = por %p176, %p177
      %p180 = scmp.ne.s32.totalorder %s163, %s179
      %p181 = scmp.eq.s32.totalorder %s37, 0
      %p182 = por %p180, %p181
      %s183 = ssub.s32 %s39, %s46
      %p184 = scmp.eq.s32.totalorder %s183, 0
      %s186 = sadd.s32 %s185, 1
      %s187 = scalar_select %p184, %s185, %s186
      %p190 = pneg %p184
      %p191 = scmp.eq.s32.totalorder %s31, 3
      %p192 = por %p190, %p191
      %p193 = scmp.ne.s32.totalorder %s185, %s188
      %p194 = scmp.eq.s32.totalorder %s31, 0
      %p195 = por %p193, %p194
      %p196 = scmp.ne.s32.totalorder %s185, %s188
      %p197 = scmp.eq.s32.totalorder %s36, 3
      %p198 = por %p196, %p197
      %p199 = scmp.ne.s32.totalorder %s188, %s189
      %p200 = scmp.eq.s32.totalorder %s36, 0
      %p201 = por %p199, %p200
      %p202 = scmp.ne.s32.totalorder %s188, %s189
      %p203 = scmp.eq.s32.totalorder %s37, 3
      %p204 = por %p202, %p203
      %p206 = scmp.ne.s32.totalorder %s189, %s205
      %p207 = scmp.eq.s32.totalorder %s37, 0
      %p208 = por %p206, %p207
      %s209 = ssub.s32 %s39, %s46
      %p210 = scmp.eq.s32.totalorder %s209, 0
      %s212 = sadd.s32 %s211, 1
      %s213 = scalar_select %p210, %s211, %s212
      %p216 = pneg %p210
      %p217 = scmp.eq.s32.totalorder %s31, 3
      %p218 = por %p216, %p217
      %p219 = scmp.ne.s32.totalorder %s211, %s214
      %p220 = scmp.eq.s32.totalorder %s31, 0
      %p221 = por %p219, %p220
      %p222 = scmp.ne.s32.totalorder %s211, %s214
      %p223 = scmp.eq.s32.totalorder %s36, 3
      %p224 = por %p222, %p223
      %p225 = scmp.ne.s32.totalorder %s214, %s215
      %p226 = scmp.eq.s32.totalorder %s36, 0
      %p227 = por %p225, %p226
      %p228 = scmp.ne.s32.totalorder %s214, %s215
      %p229 = scmp.eq.s32.totalorder %s37, 3
      %p230 = por %p228, %p229
      %p232 = scmp.ne.s32.totalorder %s215, %s231
      %p233 = scmp.eq.s32.totalorder %s37, 0
      %p234 = por %p232, %p233
      %s235 = ssub.s32 %s39, %s46
      %p236 = scmp.eq.s32.totalorder %s235, 0
      %s238 = sadd.s32 %s237, 1
      %s239 = scalar_select %p236, %s237, %s238
      %p242 = pneg %p236
      %p243 = scmp.eq.s32.totalorder %s31, 3
      %p244 = por %p242, %p243
      %p245 = scmp.ne.s32.totalorder %s237, %s240
      %p246 = scmp.eq.s32.totalorder %s31, 0
      %p247 = por %p245, %p246
      %p248 = scmp.ne.s32.totalorder %s237, %s240
      %p249 = scmp.eq.s32.totalorder %s36, 3
      %p250 = por %p248, %p249
      %p251 = scmp.ne.s32.totalorder %s240, %s241
      %p252 = scmp.eq.s32.totalorder %s36, 0
      %p253 = por %p251, %p252
      %p254 = scmp.ne.s32.totalorder %s240, %s241
      %p255 = scmp.eq.s32.totalorder %s37, 3
      %p256 = por %p254, %p255
      %p258 = scmp.ne.s32.totalorder %s241, %s257
      %p259 = scmp.eq.s32.totalorder %s37, 0
      %p260 = por %p258, %p259
      %s261 = ssub.s32 %s39, %s46
      %p262 = scmp.eq.s32.totalorder %s261, 0
      %s264 = sadd.s32 %s263, 1
      %s265 = scalar_select %p262, %s263, %s264
      %p268 = pneg %p262
      %p269 = scmp.eq.s32.totalorder %s31, 3
      %p270 = por %p268, %p269
      %p271 = scmp.ne.s32.totalorder %s263, %s266
      %p272 = scmp.eq.s32.totalorder %s31, 0
      %p273 = por %p271, %p272
      %p274 = scmp.ne.s32.totalorder %s263, %s266
      %p275 = scmp.eq.s32.totalorder %s36, 3
      %p276 = por %p274, %p275
      %p277 = scmp.ne.s32.totalorder %s266, %s267
      %p278 = scmp.eq.s32.totalorder %s36, 0
      %p279 = por %p277, %p278
      %p280 = scmp.ne.s32.totalorder %s266, %s267
      %p281 = scmp.eq.s32.totalorder %s37, 3
      %p282 = por %p280, %p281
      %p284 = scmp.ne.s32.totalorder %s267, %s283
      %p285 = scmp.eq.s32.totalorder %s37, 0
      %p286 = por %p284, %p285
      %s287 = ssub.s32 %s39, %s46
      %p288 = scmp.eq.s32.totalorder %s287, 0
      %s290 = sadd.s32 %s289, 1
      %s291 = scalar_select %p288, %s289, %s290
      %p294 = pneg %p288
      %p295 = scmp.eq.s32.totalorder %s31, 3
      %p296 = por %p294, %p295
      %p297 = scmp.ne.s32.totalorder %s289, %s292
      %p298 = scmp.eq.s32.totalorder %s31, 0
      %p299 = por %p297, %p298
      %p300 = scmp.ne.s32.totalorder %s289, %s292
      %p301 = scmp.eq.s32.totalorder %s36, 3
      %p302 = por %p300, %p301
      %p303 = scmp.ne.s32.totalorder %s292, %s293
      %p304 = scmp.eq.s32.totalorder %s36, 0
      %p305 = por %p303, %p304
      %p306 = scmp.ne.s32.totalorder %s292, %s293
      %p307 = scmp.eq.s32.totalorder %s37, 3
      %p308 = por %p306, %p307
      %p310 = scmp.ne.s32.totalorder %s293, %s309
      %p311 = scmp.eq.s32.totalorder %s37, 0
      %p312 = por %p310, %p311
      %s313 = ssub.s32 %s39, %s46
      %p314 = scmp.eq.s32.totalorder %s313, 0
      %s316 = sadd.s32 %s315, 1
      %s317 = scalar_select %p314, %s315, %s316
      %p320 = pneg %p314
      %p321 = scmp.eq.s32.totalorder %s31, 3
      %p322 = por %p320, %p321
      %p323 = scmp.ne.s32.totalorder %s315, %s318
      %p324 = scmp.eq.s32.totalorder %s31, 0
      %p325 = por %p323, %p324
      %p326 = scmp.ne.s32.totalorder %s315, %s318
      %p327 = scmp.eq.s32.totalorder %s36, 3
      %p328 = por %p326, %p327
      %p329 = scmp.ne.s32.totalorder %s318, %s319
      %p330 = scmp.eq.s32.totalorder %s36, 0
      %p331 = por %p329, %p330
      %p332 = scmp.ne.s32.totalorder %s318, %s319
      %p333 = scmp.eq.s32.totalorder %s37, 3
      %p334 = por %p332, %p333
      %p336 = scmp.ne.s32.totalorder %s319, %s335
      %p337 = scmp.eq.s32.totalorder %s37, 0
      %p338 = por %p336, %p337
      %s339 = ssub.s32 %s39, %s46
      %p340 = scmp.eq.s32.totalorder %s339, 0
      %s342 = sadd.s32 %s341, 1
      %s343 = scalar_select %p340, %s341, %s342
      %p346 = pneg %p340
      %p347 = scmp.eq.s32.totalorder %s31, 3
      %p348 = por %p346, %p347
      %p349 = scmp.ne.s32.totalorder %s341, %s344
      %p350 = scmp.eq.s32.totalorder %s31, 0
      %p351 = por %p349, %p350
      %p352 = scmp.ne.s32.totalorder %s341, %s344
      %p353 = scmp.eq.s32.totalorder %s36, 3
      %p354 = por %p352, %p353
      %p355 = scmp.ne.s32.totalorder %s344, %s345
      %p356 = scmp.eq.s32.totalorder %s36, 0
      %p357 = por %p355, %p356
      %p358 = scmp.ne.s32.totalorder %s344, %s345
      %p359 = scmp.eq.s32.totalorder %s37, 3
      %p360 = por %p358, %p359
      %p362 = scmp.ne.s32.totalorder %s345, %s361
      %p363 = scmp.eq.s32.totalorder %s37, 0
      %p364 = por %p362, %p363
      %s365 = ssub.s32 %s39, %s46
      %p366 = scmp.eq.s32.totalorder %s365, 0
      %s368 = sadd.s32 %s367, 1
      %s369 = scalar_select %p366, %s367, %s368
      %p372 = pneg %p366
      %p373 = scmp.eq.s32.totalorder %s31, 3
      %p374 = por %p372, %p373
      %p375 = scmp.ne.s32.totalorder %s367, %s370
      %p376 = scmp.eq.s32.totalorder %s31, 0
      %p377 = por %p375, %p376
      %p378 = scmp.ne.s32.totalorder %s367, %s370
      %p379 = scmp.eq.s32.totalorder %s36, 3
      %p380 = por %p378, %p379
      %p381 = scmp.ne.s32.totalorder %s370, %s371
      %p382 = scmp.eq.s32.totalorder %s36, 0
      %p383 = por %p381, %p382
      %p384 = scmp.ne.s32.totalorder %s370, %s371
      %p385 = scmp.eq.s32.totalorder %s37, 3
      %p386 = por %p384, %p385
      %p388 = scmp.ne.s32.totalorder %s371, %s387
      %p389 = scmp.eq.s32.totalorder %s37, 0
      %p390 = por %p388, %p389
      %s391 = ssub.s32 %s38, %s50
      %p392 = scmp.eq.s32.totalorder %s391, 0
      %s394 = sadd.s32 %s393, 1
      %s395 = scalar_select %p392, %s393, %s394
      %p398 = pneg %p392
      %p399 = scmp.eq.s32.totalorder %s31, 3
      %p400 = por %p398, %p399
      %p401 = scmp.ne.s32.totalorder %s393, %s396
      %p402 = scmp.eq.s32.totalorder %s31, 0
      %p403 = por %p401, %p402
      %p404 = scmp.ne.s32.totalorder %s393, %s396
      %p405 = scmp.eq.s32.totalorder %s36, 3
      %p406 = por %p404, %p405
      %p407 = scmp.ne.s32.totalorder %s396, %s397
      %p408 = scmp.eq.s32.totalorder %s36, 0
      %p409 = por %p407, %p408
      %p410 = scmp.ne.s32.totalorder %s396, %s397
      %p411 = scmp.eq.s32.totalorder %s37, 3
      %p412 = por %p410, %p411
      %p414 = scmp.ne.s32.totalorder %s397, %s413
      %p415 = scmp.eq.s32.totalorder %s37, 0
      %p416 = por %p414, %p415
      %p417 = scmp.le.s32.totalorder 1, %s31
      %p418 = scmp.lt.s32.totalorder %s31, 5
      %p419 = pnand %p417, %p418
      %p420 = pneg %p419
      // Predicated region
      $region9: #{tpu_custom_call.1} parent=5 // pred_check
        _
      $region10: #{tpu_custom_call.1} parent=5 // pred_check_branch
        %422 = sbr.rel (%p419) target = $region12
      $region11: #{tpu_custom_call.1} parent=5 // pred_region
        %s423 = ssub.s32 %s31, 1
      $region12: #{tpu_custom_call.1} parent=5 // pred_fallthru
        _
      %p424 = scmp.lt.s32.totalorder %s31, 4
      // Predicated region
      $region13: #{tpu_custom_call.1} parent=5 // pred_check
        %p425 = pneg %p424
      $region14: #{tpu_custom_call.1} parent=5 // pred_check_branch
        %427 = sbr.rel (%p425) target = $region16
      $region15: #{tpu_custom_call.1} parent=5 // pred_region
        // Predicated region
        $region17: #{tpu_custom_call.1} parent=15 // pred_check
          %p428 = pneg %p63
        $region18: #{tpu_custom_call.1} parent=15 // pred_check_branch
          %430 = sbr.rel (%p428) target = $region20
        $region19: #{tpu_custom_call.1} parent=15 // pred_region
          %s431 = sand.u32 %s53, 1
          %s432 = scalar_lea.sflag [#allocation6], %s431
          %s433 = sand.u32 %s53, 1
          %s434 = smul.addr %s433, 16
          %s435 = scalar_lea.vmem [#allocation5], %s434
          %s437 = ssub.s32 256, 256
          %438 = vsyncadd %s432, %s437
          %s439 = smul.addr %s38, 2
          %s440 = smul.addr %s439, 128
          %s441 = scalar_lea.hbm %s0, %s440
          %s442 = sshll.u32 %s435, 4
          %s443 = int_to_ptr.vmem [resolvable:$true] %s442
          %448 = dma.hbm_to_vmem [thread:$0]  %s441, 256, %s443, %s432, 128, 128, 8
        $region20: #{tpu_custom_call.1} parent=15 // pred_fallthru
          _
        // Predicated region
        $region21: #{tpu_custom_call.1} parent=15 // pred_check
          %p449 = pneg %p89
        $region22: #{tpu_custom_call.1} parent=15 // pred_check_branch
          %451 = sbr.rel (%p449) target = $region24
        $region23: #{tpu_custom_call.1} parent=15 // pred_region
          %p452 = scmp.lt.s32.totalorder %s38, 1
          %s453 = scalar_select %p452, %s38, 1
          %s454 = smul.addr %s453, 2
          %s455 = smul.addr %s454, 8
          %s456 = scalar_lea.vmem %s1, %s455
        $region24: #{tpu_custom_call.1} parent=15 // pred_fallthru
          _
        // Predicated region
        $region25: #{tpu_custom_call.1} parent=15 // pred_check
          %p457 = pneg %p117
        $region26: #{tpu_custom_call.1} parent=15 // pred_check_branch
          %459 = sbr.rel (%p457) target = $region28
        $region27: #{tpu_custom_call.1} parent=15 // pred_region
          %s460 = sand.u32 %s31, 1
          %s461 = scalar_lea.sflag [#allocation9], %s460
          %s462 = sand.u32 %s107, 1
          %s463 = smul.addr %s462, 2
          %s464 = scalar_lea.vmem [#allocation8], %s463
          %s466 = ssub.s32 32, 32
          %467 = vsyncadd %s461, %s466
          %s468 = smul.addr %s38, 2
          %s469 = sadd.s32 %s39, %s468
          %s470 = smul.addr %s469, 32
          %s471 = scalar_lea.hbm %s2, %s470
          %s473 = sshll.u32 %s464, 4
          %s474 = int_to_ptr.vmem [resolvable:$true] %s473
          %476 = dma.hbm_to_vmem [thread:$0]  %s471, 32, %s474, %s461
        $region28: #{tpu_custom_call.1} parent=15 // pred_fallthru
          _
        // Predicated region
        $region29: #{tpu_custom_call.1} parent=15 // pred_check
          %p477 = pneg %p143
        $region30: #{tpu_custom_call.1} parent=15 // pred_check_branch
          %479 = sbr.rel (%p477) target = $region32
        $region31: #{tpu_custom_call.1} parent=15 // pred_region
          %s480 = sand.u32 %s31, 1
          %s481 = scalar_lea.sflag [#allocation9], %s480
          %s482 = sand.u32 %s133, 1
          %s483 = smul.addr %s482, 8
          %s484 = scalar_lea.vmem [#allocation10], %s483
          %s486 = ssub.s32 128, 128
          %487 = vsyncadd %s481, %s486
          %s488 = smul.addr %s39, 2
          %s489 = smul.addr %s488, 64
          %s490 = scalar_lea.hbm %s3, %s489
          %s491 = sshll.u32 %s484, 4
          %s492 = int_to_ptr.vmem [resolvable:$true] %s491
          %497 = dma.hbm_to_vmem [thread:$0]  %s490, 128, %s492, %s481, 64, 64, 4
        $region32: #{tpu_custom_call.1} parent=15 // pred_fallthru
          _
        // Predicated region
        $region33: #{tpu_custom_call.1} parent=15 // pred_check
          %p498 = pneg %p169
        $region34: #{tpu_custom_call.1} parent=15 // pred_check_branch
          %500 = sbr.rel (%p498) target = $region36
        $region35: #{tpu_custom_call.1} parent=15 // pred_region
          %p501 = scmp.lt.s32.totalorder %s39, 1
          %s502 = scalar_select %p501, %s39, 1
          %s503 = scalar_lea.vmem %s4, %s502
        $region36: #{tpu_custom_call.1} parent=15 // pred_fallthru
          _
        // Predicated region
        $region37: #{tpu_custom_call.1} parent=15 // pred_check
          %p504 = pneg %p195
        $region38: #{tpu_custom_call.1} parent=15 // pred_check_branch
          %506 = sbr.rel (%p504) target = $region40
        $region39: #{tpu_custom_call.1} parent=15 // pred_region
          %s507 = sand.u32 %s185, 1
          %s508 = scalar_lea.sflag [#allocation12], %s507
          %s509 = sand.u32 %s185, 1
          %s510 = smul.addr %s509, 160
          %s511 = scalar_lea.vmem [#allocation11], %s510
          %s513 = ssub.s32 2560, 2560
          %514 = vsyncadd %s508, %s513
          %s515 = smul.addr %s39, 40
          %s516 = smul.addr %s515, 64
          %s517 = scalar_lea.hbm %s5, %s516
          %s518 = sshll.u32 %s511, 4
          %s519 = int_to_ptr.vmem [resolvable:$true] %s518
          %524 = dma.hbm_to_vmem [thread:$0]  %s517, 2560, %s519, %s508, 64, 64, 4
        $region40: #{tpu_custom_call.1} parent=15 // pred_fallthru
          _
        // Predicated region
        $region41: #{tpu_custom_call.1} parent=15 // pred_check
          %p525 = pneg %p221
        $region42: #{tpu_custom_call.1} parent=15 // pred_check_branch
          %527 = sbr.rel (%p525) target = $region44
        $region43: #{tpu_custom_call.1} parent=15 // pred_region
          %p528 = scmp.lt.s32.totalorder %s39, 1
          %s529 = scalar_select %p528, %s39, 1
          %s530 = smul.addr %s529, 2
          %s531 = scalar_lea.vmem %s6, %s530
        $region44: #{tpu_custom_call.1} parent=15 // pred_fallthru
          _
        // Predicated region
        $region45: #{tpu_custom_call.1} parent=15 // pred_check
          %p532 = pneg %p247
        $region46: #{tpu_custom_call.1} parent=15 // pred_check_branch
          %534 = sbr.rel (%p532) target = $region48
        $region47: #{tpu_custom_call.1} parent=15 // pred_region
          %p535 = scmp.lt.s32.totalorder %s39, 1
          %s536 = scalar_select %p535, %s39, 1
          %s537 = smul.addr %s536, 4
          %s538 = smul.addr %s537, 8
          %s539 = scalar_lea.vmem %s7, %s538
        $region48: #{tpu_custom_call.1} parent=15 // pred_fallthru
          _
        // Predicated region
        $region49: #{tpu_custom_call.1} parent=15 // pred_check
          %p540 = pneg %p273
        $region50: #{tpu_custom_call.1} parent=15 // pred_check_branch
          %542 = sbr.rel (%p540) target = $region52
        $region51: #{tpu_custom_call.1} parent=15 // pred_region
          %p543 = scmp.lt.s32.totalorder %s39, 1
          %s544 = scalar_select %p543, %s39, 1
          %s545 = scalar_lea.vmem %s8, %s544
        $region52: #{tpu_custom_call.1} parent=15 // pred_fallthru
          _
        // Predicated region
        $region53: #{tpu_custom_call.1} parent=15 // pred_check
          %p546 = pneg %p299
        $region54: #{tpu_custom_call.1} parent=15 // pred_check_branch
          %548 = sbr.rel (%p546) target = $region56
        $region55: #{tpu_custom_call.1} parent=15 // pred_region
          %p549 = scmp.lt.s32.totalorder %s39, 1
          %s550 = scalar_select %p549, %s39, 1
          %s551 = smul.addr %s550, 4
          %s552 = smul.addr %s551, 8
          %s553 = scalar_lea.vmem %s9, %s552
        $region56: #{tpu_custom_call.1} parent=15 // pred_fallthru
          _
        // Predicated region
        $region57: #{tpu_custom_call.1} parent=15 // pred_check
          %p554 = pneg %p325
        $region58: #{tpu_custom_call.1} parent=15 // pred_check_branch
          %556 = sbr.rel (%p554) target = $region60
        $region59: #{tpu_custom_call.1} parent=15 // pred_region
          %p557 = scmp.lt.s32.totalorder %s39, 1
          %s558 = scalar_select %p557, %s39, 1
          %s559 = scalar_lea.vmem %s10, %s558
        $region60: #{tpu_custom_call.1} parent=15 // pred_fallthru
          _
        // Predicated region
        $region61: #{tpu_custom_call.1} parent=15 // pred_check
          %p560 = pneg %p351
        $region62: #{tpu_custom_call.1} parent=15 // pred_check_branch
          %562 = sbr.rel (%p560) target = $region64
        $region63: #{tpu_custom_call.1} parent=15 // pred_region
          %p563 = scmp.lt.s32.totalorder %s39, 1
          %s564 = scalar_select %p563, %s39, 1
          %s565 = smul.addr %s564, 4
          %s566 = smul.addr %s565, 8
          %s567 = scalar_lea.vmem %s11, %s566
        $region64: #{tpu_custom_call.1} parent=15 // pred_fallthru
          _
        // Predicated region
        $region65: #{tpu_custom_call.1} parent=15 // pred_check
          %p568 = pneg %p377
        $region66: #{tpu_custom_call.1} parent=15 // pred_check_branch
          %570 = sbr.rel (%p568) target = $region68
        $region67: #{tpu_custom_call.1} parent=15 // pred_region
          %p571 = scmp.lt.s32.totalorder %s39, 1
          %s572 = scalar_select %p571, %s39, 1
          %s573 = scalar_lea.vmem %s12, %s572
        $region68: #{tpu_custom_call.1} parent=15 // pred_fallthru
          _
      $region16: #{tpu_custom_call.1} parent=5 // pred_fallthru
        _
      %p574 = scmp.le.s32.totalorder 1, %s31
      %p575 = scmp.lt.s32.totalorder %s31, 5
      %p576 = pnand %p574, %p575
      %p577 = pneg %p576
      // Predicated region
      $region69: #{tpu_custom_call.1} parent=5 // pred_check
        _
      $region70: #{tpu_custom_call.1} parent=5 // pred_check_branch
        %579 = sbr.rel (%p576) target = $region72
      $region71: #{tpu_custom_call.1} parent=5 // pred_region
        %s580 = ssub.s32 %s31, 1
        %s581 = sand.u32 %s56, 1
        %s582 = scalar_lea.sflag [#allocation6], %s581
        %s583 = sand.u32 %s56, 1
        %s584 = smul.addr %s583, 16
        %s585 = scalar_lea.vmem [#allocation5], %s584
        // Predicated region
        $region73: #{tpu_custom_call.1} parent=71 // pred_check
          %p586 = pneg %p69
        $region74: #{tpu_custom_call.1} parent=71 // pred_check_branch
          %588 = sbr.rel (%p586) target = $region76
        $region75: #{tpu_custom_call.1} parent=71 // pred_region
          %589 = dma.done %s582, 256
        $region76: #{tpu_custom_call.1} parent=71 // pred_fallthru
          _
        %s590 = sand.u32 %s36, 1
        %s591 = scalar_lea.sflag [#allocation9], %s590
        %s592 = sand.u32 %s110, 1
        %s593 = smul.addr %s592, 2
        %s594 = scalar_lea.vmem [#allocation8], %s593
        // Predicated region
        $region77: #{tpu_custom_call.1} parent=71 // pred_check
          %p595 = pneg %p123
        $region78: #{tpu_custom_call.1} parent=71 // pred_check_branch
          %597 = sbr.rel (%p595) target = $region80
        $region79: #{tpu_custom_call.1} parent=71 // pred_region
          %598 = dma.done %s591, 32
        $region80: #{tpu_custom_call.1} parent=71 // pred_fallthru
          _
        %s599 = sand.u32 %s36, 1
        %s600 = scalar_lea.sflag [#allocation9], %s599
        %s601 = sand.u32 %s136, 1
        %s602 = smul.addr %s601, 8
        %s603 = scalar_lea.vmem [#allocation10], %s602
        // Predicated region
        $region81: #{tpu_custom_call.1} parent=71 // pred_check
          %p604 = pneg %p149
        $region82: #{tpu_custom_call.1} parent=71 // pred_check_branch
          %606 = sbr.rel (%p604) target = $region84
        $region83: #{tpu_custom_call.1} parent=71 // pred_region
          %607 = dma.done %s600, 128
        $region84: #{tpu_custom_call.1} parent=71 // pred_fallthru
          _
        %s608 = sand.u32 %s188, 1
        %s609 = scalar_lea.sflag [#allocation12], %s608
        %s610 = sand.u32 %s188, 1
        %s611 = smul.addr %s610, 160
        %s612 = scalar_lea.vmem [#allocation11], %s611
        // Predicated region
        $region85: #{tpu_custom_call.1} parent=71 // pred_check
          %p613 = pneg %p201
        $region86: #{tpu_custom_call.1} parent=71 // pred_check_branch
          %615 = sbr.rel (%p613) target = $region88
        $region87: #{tpu_custom_call.1} parent=71 // pred_region
          %616 = dma.done %s609, 2560
        $region88: #{tpu_custom_call.1} parent=71 // pred_fallthru
          _
        %s617 = sand.u32 %s56, 1
        %s618 = scalar_lea.sflag [#allocation6], %s617
        %s619 = sand.u32 %s56, 1
        %s620 = smul.addr %s619, 16
        %s621 = scalar_lea.vmem [#allocation5], %s620
        %p622 = pneg %p69
        %p623 = pneg %p66
        %p624 = scmp.lt.s32.totalorder %s40, 1
        %s625 = scalar_select %p624, %s40, 1
        %s626 = smul.addr %s625, 2
        %s627 = smul.addr %s626, 8
        %s628 = scalar_lea.vmem %s1, %s627
        %p629 = pneg %p95
        %p630 = pneg %p92
        %s631 = sand.u32 %s36, 1
        %s632 = scalar_lea.sflag [#allocation9], %s631
        %s633 = sand.u32 %s110, 1
        %s634 = smul.addr %s633, 2
        %s635 = scalar_lea.vmem [#allocation8], %s634
        %p636 = pneg %p123
        %p637 = pneg %p120
        %s638 = sand.u32 %s36, 1
        %s639 = scalar_lea.sflag [#allocation9], %s638
        %s640 = sand.u32 %s136, 1
        %s641 = smul.addr %s640, 8
        %s642 = scalar_lea.vmem [#allocation10], %s641
        %p643 = pneg %p149
        %p644 = pneg %p146
        %p645 = scmp.lt.s32.totalorder %s41, 1
        %s646 = scalar_select %p645, %s41, 1
        %s647 = scalar_lea.vmem %s4, %s646
        %p648 = pneg %p175
        %p649 = pneg %p172
        %s650 = sand.u32 %s188, 1
        %s651 = scalar_lea.sflag [#allocation12], %s650
        %s652 = sand.u32 %s188, 1
        %s653 = smul.addr %s652, 160
        %s654 = scalar_lea.vmem [#allocation11], %s653
        %p655 = pneg %p201
        %p656 = pneg %p198
        %p657 = scmp.lt.s32.totalorder %s41, 1
        %s658 = scalar_select %p657, %s41, 1
        %s659 = smul.addr %s658, 2
        %s660 = scalar_lea.vmem %s6, %s659
        %p661 = pneg %p227
        %p662 = pneg %p224
        %p663 = scmp.lt.s32.totalorder %s41, 1
        %s664 = scalar_select %p663, %s41, 1
        %s665 = smul.addr %s664, 4
        %s666 = smul.addr %s665, 8
        %s667 = scalar_lea.vmem %s7, %s666
        %p668 = pneg %p253
        %p669 = pneg %p250
        %p670 = scmp.lt.s32.totalorder %s41, 1
        %s671 = scalar_select %p670, %s41, 1
        %s672 = scalar_lea.vmem %s8, %s671
        %p673 = pneg %p279
        %p674 = pneg %p276
        %p675 = scmp.lt.s32.totalorder %s41, 1
        %s676 = scalar_select %p675, %s41, 1
        %s677 = smul.addr %s676, 4
        %s678 = smul.addr %s677, 8
        %s679 = scalar_lea.vmem %s9, %s678
        %p680 = pneg %p305
        %p681 = pneg %p302
        %p682 = scmp.lt.s32.totalorder %s41, 1
        %s683 = scalar_select %p682, %s41, 1
        %s684 = scalar_lea.vmem %s10, %s683
        %p685 = pneg %p331
        %p686 = pneg %p328
        %p687 = scmp.lt.s32.totalorder %s41, 1
        %s688 = scalar_select %p687, %s41, 1
        %s689 = smul.addr %s688, 4
        %s690 = smul.addr %s689, 8
        %s691 = scalar_lea.vmem %s11, %s690
        %p692 = pneg %p357
        %p693 = pneg %p354
        %p694 = scmp.lt.s32.totalorder %s41, 1
        %s695 = scalar_select %p694, %s41, 1
        %s696 = scalar_lea.vmem %s12, %s695
        %p697 = pneg %p383
        %p698 = pneg %p380
        %p699 = pneg %p409
        %p700 = pneg %p406
        %s701 = sand.u32 %s396, 1
        %s702 = scalar_lea.sflag [#allocation7], %s701
        %s703 = sand.u32 %s396, 1
        %s704 = smul.addr %s703, 16
        %s705 = scalar_lea.vmem [#allocation13], %s704
        %p706 = scmp.lt.s32.totalorder %s40, 1
        %s707 = scalar_select %p706, %s40, 1
        %s708 = smul.addr %s707, 2
        %s709 = smul.addr %s708, 8
        %s710 = scalar_lea.vmem %s1, %s709
        %p711 = scmp.lt.s32.totalorder %s41, 1
        %s712 = scalar_select %p711, %s41, 1
        %s713 = scalar_lea.vmem %s4, %s712
        %p714 = scmp.lt.s32.totalorder %s41, 1
        %s715 = scalar_select %p714, %s41, 1
        %s716 = smul.addr %s715, 2
        %s717 = scalar_lea.vmem %s6, %s716
        %p718 = scmp.lt.s32.totalorder %s41, 1
        %s719 = scalar_select %p718, %s41, 1
        %s720 = smul.addr %s719, 4
        %s721 = smul.addr %s720, 8
        %s722 = scalar_lea.vmem %s7, %s721
        %p723 = scmp.lt.s32.totalorder %s41, 1
        %s724 = scalar_select %p723, %s41, 1
        %s725 = scalar_lea.vmem %s8, %s724
        %p726 = scmp.lt.s32.totalorder %s41, 1
        %s727 = scalar_select %p726, %s41, 1
        %s728 = smul.addr %s727, 4
        %s729 = smul.addr %s728, 8
        %s730 = scalar_lea.vmem %s9, %s729
        %p731 = scmp.lt.s32.totalorder %s41, 1
        %s732 = scalar_select %p731, %s41, 1
        %s733 = scalar_lea.vmem %s10, %s732
        %p734 = scmp.lt.s32.totalorder %s41, 1
        %s735 = scalar_select %p734, %s41, 1
        %s736 = smul.addr %s735, 4
        %s737 = smul.addr %s736, 8
        %s738 = scalar_lea.vmem %s11, %s737
        %p739 = scmp.lt.s32.totalorder %s41, 1
        %s740 = scalar_select %p739, %s41, 1
        %s741 = scalar_lea.vmem %s12, %s740
        %v743 = vld [vmem:[%s710] sm:$0xff]
        %v744 = vld [vmem:[%s710 + $0x8] sm:$0xff]
        %746 = vset.pattern.permute.xlu0 0
        %747 = vperm.xlu0 %746, %v743
        %v748 = vpop.permute.xlu0 %747
        %751 = vset.pattern.permute.xlu0 0
        %752 = vperm.xlu0 %751, %v744
        %v753 = vpop.permute.xlu0 %752
        %p755 = scmp.eq.s32.totalorder %s41, 0
        // Predicated region
        $region89: #{tpu_custom_call.1} parent=71 // pred_check
          %p756 = pneg %p755
        $region90: #{tpu_custom_call.1} parent=71 // pred_check_branch
          %758 = sbr.rel (%p756) target = $region92
        $region91: #{tpu_custom_call.1} parent=71 // pred_region
          %v759 = vld [vmem:[%s585] sm:$0xff]
          %v760 = vld [vmem:[%s585 + $0x8] sm:$0xff]
          %vm761 = vcmask 130048
          %762 = vst.msk [vmem:[#allocation2] sm:$0xff] %vm761, %v759
          %763 = vst.msk [vmem:[#allocation2 + $0x8] sm:$0xff] %vm761, %v760
          %766 = vrot.lane.b32.xlu0 %v759, 112
          %v767 = vpop.permute.xlu0 %766
          %768 = vrot.lane.b32.xlu0 %v760, 112
          %v769 = vpop.permute.xlu0 %768
          %772 = vst.msk [vmem:[#allocation3] sm:$0xff] %vm761, %v767
          %773 = vst.msk [vmem:[#allocation3 + $0x8] sm:$0xff] %vm761, %v769
        $region92: #{tpu_custom_call.1} parent=71 // pred_fallthru
          _
        %vm774 = vcmask 254976
        %775 = vst.msk [vmem:[#allocation4] sm:$0x3] %vm774, 0.0
        %776 = vst.msk [vmem:[#allocation4 + $0x12] sm:$0x3] %vm774, 0.0
        %v777 = vld [vmem:[#allocation2] sm:$0xff]
        %v778 = vld [vmem:[#allocation2 + $0x8] sm:$0xff]
        %v779 = vld [vmem:[#allocation3] sm:$0xff]
        %v780 = vld [vmem:[#allocation3 + $0x8] sm:$0xff]
        %v781 = vpack.c.bf16 %v778, %v777
        %v782 = vld [vmem:[%s603] sm:$0xf]
        %v783 = vld [vmem:[%s603 + $0x4] sm:$0xf]
        %v784 = vld [vmem:[%s713] sm:$0x1]
        %v786 = vlaneseq
        %v787 = vshrl.u32 %v786, 7
        %v788 = vsub.s32 0, %v787
        %v789 = vrot.slane %v784, %v788
        %v793 = vunpack.c.l.b16 %v782
        %v794 = vunpack.c.l.b16 %v783
        %v795 = vpack.c.b16 %v794, %v793
        %vm797 = vcmask 130048
        %v799 = vsel %vm797, %v781, 0
        %801 = vmatprep.subr.bf16.mxu0 0
        %802 = vmatpush1.bf16.msra.mxu0 0
        %803 = vmatprep.subr.bf16.mxu0 0
        %804 = vmatpush1.bf16.msra.mxu0 0
        %805 = vmatprep.subr.bf16.mxu0 0
        %806 = vmatpush1.bf16.msra.mxu0 0
        %807 = vmatprep.subr.bf16.mxu0 0
        %808 = vmatpush1.bf16.msra.mxu0 0
        %809 = vmatprep.subr.bf16.mxu0 0
        %810 = vmatpush1.bf16.msra.mxu0 0
        %811 = vmatprep.subr.bf16.mxu0 0
        %812 = vmatpush1.bf16.msra.mxu0 0
        %813 = vmatprep.subr.bf16.mxu0 0
        %814 = vmatpush1.bf16.msra.mxu0 0
        %815 = vmatprep.subr.bf16.mxu0 0
        %816 = vmatpush1.bf16.msra.mxu0 %v795
        %817 = vmatprep.subr.bf16.mxu0 0
        %818 = vmatpush2.bf16.msra.mxu0 0
        %819 = vmatprep.subr.bf16.mxu0 0
        %820 = vmatpush2.bf16.msra.mxu0 0
        %821 = vmatprep.subr.bf16.mxu0 0
        %822 = vmatpush2.bf16.msra.mxu0 0
        %823 = vmatprep.subr.bf16.mxu0 0
        %824 = vmatpush2.bf16.msra.mxu0 0
        %825 = vmatprep.subr.bf16.mxu0 0
        %826 = vmatpush2.bf16.msra.mxu0 0
        %827 = vmatprep.subr.bf16.mxu0 0
        %828 = vmatpush2.bf16.msra.mxu0 0
        %829 = vmatprep.subr.bf16.mxu0 0
        %830 = vmatpush2.bf16.msra.mxu0 0
        %831 = vmatprep.subr.bf16.mxu0 0
        %832 = vmatpush2.bf16.msra.mxu0 0
        %833 = vmatprep.mubr.bf16.mxu0 0
        %834 = vmatmul.mubr.bf16.gmra.mxu0 %v799
        %v835 = vpop.f32.mrf.mxu0
        %v836 = vadd.f32 %v789, %v835
        %v837 = vpop.f32.mrf.mxu0
        %v838 = vpop.f32.mrf.mxu0
        %v839 = vadd.f32 %v789, %v838
        %v840 = vpop.f32.mrf.mxu0
        %841 = vdwg.mxu0
        %v842 = vmul.f32 %v836, %v748
        %v843 = vmul.f32 %v839, %v753
        %v844 = vld [vmem:[%s594] sm:$0x3]
        %vm845 = vcmask 261120
        %846 = vst.msk [vmem:[#allocation4 + $0x2] sm:$0xff] %vm845, %v842
        %847 = vst.msk [vmem:[#allocation4 + $0xa] sm:$0xff] %vm845, %v843
        %v848 = vld [vmem:[#allocation4] sm:$0xff]
        %v849 = vld [vmem:[#allocation4 + $0x8] sm:$0xff]
        %v850 = vld [vmem:[#allocation4 + $0x10] sm:$0xf]
        %v851 = vpack.c.bf16 %v849, %v848
        %v852 = vld [vmem:[%s612] sm:$0xf]
        %v853 = vld [vmem:[%s612 + $0x4] sm:$0xf]
        %v854 = vld [vmem:[%s612 + $0x8] sm:$0xf]
        %v855 = vld [vmem:[%s612 + $0xc] sm:$0xf]
        %v856 = vpack.c.bf16 %v850, %v850
        %s857 = scalar_lea.vmem %s612, 16 [#allocation11]
        %v858 = vld [vmem:[%s857] sm:$0xf]
        %v859 = vld [vmem:[%s857 + $0x4] sm:$0xf]
        %v860 = vld [vmem:[%s857 + $0x8] sm:$0xf]
        %v861 = vld [vmem:[%s857 + $0xc] sm:$0xf]
        %vm862 = vsmask.f32 7424
        %v864 = vshrl.u32 %v851, 16
        %v866 = vshll.u32 %v851, 16
        %v868 = vrot.slane %v866, 1
        %v869 = vor.u32 %v864, %v868
        %v871 = vshll.u32 %v856, 16
        %v873 = vrot.slane %v871, 1
        %v874 = vsel %vm862, %v869, %v873
        %v879 = vunpack.c.l.b16 %v858
        %v880 = vunpack.c.l.b16 %v859
        %v881 = vunpack.c.l.b16 %v860
        %v882 = vunpack.c.l.b16 %v861
        %v883 = vpack.c.b16 %v880, %v879
        %v884 = vpack.c.b16 %v882, %v881
        %v888 = vsel %vm845, %v874, 0
        %890 = vmatprep.subr.bf16.mxu0 0
        %891 = vmatpush1.bf16.msra.mxu0 0
        %892 = vmatprep.subr.bf16.mxu0 0
        %893 = vmatpush1.bf16.msra.mxu0 0
        %894 = vmatprep.subr.bf16.mxu0 0
        %895 = vmatpush1.bf16.msra.mxu0 0
        %896 = vmatprep.subr.bf16.mxu0 0
        %897 = vmatpush1.bf16.msra.mxu0 0
        %898 = vmatprep.subr.bf16.mxu0 0
        %899 = vmatpush1.bf16.msra.mxu0 0
        %900 = vmatprep.subr.bf16.mxu0 0
        %901 = vmatpush1.bf16.msra.mxu0 0
        %902 = vmatprep.subr.bf16.mxu0 0
        %903 = vmatpush1.bf16.msra.mxu0 %v884
        %904 = vmatprep.subr.bf16.mxu0 0
        %905 = vmatpush1.bf16.msra.mxu0 %v883
        %906 = vmatprep.subr.bf16.mxu0 0
        %907 = vmatpush2.bf16.msra.mxu0 0
        %908 = vmatprep.subr.bf16.mxu0 0
        %909 = vmatpush2.bf16.msra.mxu0 0
        %910 = vmatprep.subr.bf16.mxu0 0
        %911 = vmatpush2.bf16.msra.mxu0 0
        %912 = vmatprep.subr.bf16.mxu0 0
        %913 = vmatpush2.bf16.msra.mxu0 0
        %914 = vmatprep.subr.bf16.mxu0 0
        %915 = vmatpush2.bf16.msra.mxu0 0
        %916 = vmatprep.subr.bf16.mxu0 0
        %917 = vmatpush2.bf16.msra.mxu0 0
        %918 = vmatprep.subr.bf16.mxu0 0
        %919 = vmatpush2.bf16.msra.mxu0 0
        %920 = vmatprep.subr.bf16.mxu0 0
        %921 = vmatpush2.bf16.msra.mxu0 0
        %922 = vmatprep.mubr.bf16.mxu0 0
        %923 = vmatmul.mubr.bf16.gmra.mxu0 %v888
        %v924 = vpop.f32.mrf.mxu0
        %v925 = vadd.f32 0.0, %v924
        %v926 = vpop.f32.mrf.mxu0
        %v927 = vpop.f32.mrf.mxu0
        %v928 = vadd.f32 0.0, %v927
        %v929 = vpop.f32.mrf.mxu0
        %930 = vdwg.mxu0
        %v935 = vunpack.c.l.b16 %v852
        %v936 = vunpack.c.l.b16 %v853
        %v937 = vunpack.c.l.b16 %v854
        %v938 = vunpack.c.l.b16 %v855
        %v939 = vpack.c.b16 %v936, %v935
        %v940 = vpack.c.b16 %v938, %v937
        %v943 = vsel %vm845, %v851, 0
        %945 = vmatprep.subr.bf16.mxu0 0
        %946 = vmatpush1.bf16.msra.mxu0 0
        %947 = vmatprep.subr.bf16.mxu0 0
        %948 = vmatpush1.bf16.msra.mxu0 0
        %949 = vmatprep.subr.bf16.mxu0 0
        %950 = vmatpush1.bf16.msra.mxu0 0
        %951 = vmatprep.subr.bf16.mxu0 0
        %952 = vmatpush1.bf16.msra.mxu0 0
        %953 = vmatprep.subr.bf16.mxu0 0
        %954 = vmatpush1.bf16.msra.mxu0 0
        %955 = vmatprep.subr.bf16.mxu0 0
        %956 = vmatpush1.bf16.msra.mxu0 0
        %957 = vmatprep.subr.bf16.mxu0 0
        %958 = vmatpush1.bf16.msra.mxu0 %v940
        %959 = vmatprep.subr.bf16.mxu0 0
        %960 = vmatpush1.bf16.msra.mxu0 %v939
        %961 = vmatprep.subr.bf16.mxu0 0
        %962 = vmatpush2.bf16.msra.mxu0 0
        %963 = vmatprep.subr.bf16.mxu0 0
        %964 = vmatpush2.bf16.msra.mxu0 0
        %965 = vmatprep.subr.bf16.mxu0 0
        %966 = vmatpush2.bf16.msra.mxu0 0
        %967 = vmatprep.subr.bf16.mxu0 0
        %968 = vmatpush2.bf16.msra.mxu0 0
        %969 = vmatprep.subr.bf16.mxu0 0
        %970 = vmatpush2.bf16.msra.mxu0 0
        %971 = vmatprep.subr.bf16.mxu0 0
        %972 = vmatpush2.bf16.msra.mxu0 0
        %973 = vmatprep.subr.bf16.mxu0 0
        %974 = vmatpush2.bf16.msra.mxu0 0
        %975 = vmatprep.subr.bf16.mxu0 0
        %976 = vmatpush2.bf16.msra.mxu0 0
        %977 = vmatprep.mubr.bf16.mxu0 0
        %978 = vmatmul.mubr.bf16.gmra.mxu0 %v943
        %v979 = vpop.f32.mrf.mxu0
        %v980 = vadd.f32 %v925, %v979
        %v981 = vpop.f32.mrf.mxu0
        %v982 = vpop.f32.mrf.mxu0
        %v983 = vadd.f32 %v928, %v982
        %v984 = vpop.f32.mrf.mxu0
        %985 = vdwg.mxu0
        %s986 = scalar_lea.vmem %s612, 32 [#allocation11]
        %v987 = vld [vmem:[%s986] sm:$0xf]
        %v988 = vld [vmem:[%s986 + $0x4] sm:$0xf]
        %v989 = vld [vmem:[%s986 + $0x8] sm:$0xf]
        %v990 = vld [vmem:[%s986 + $0xc] sm:$0xf]
        %vm993 = vcmask 1046528
        %v994 = vrot.slane %v851, 1
        %v995 = vrot.slane %v856, 1
        %v996 = vsel %vm993, %v994, %v995
        %v1001 = vunpack.c.l.b16 %v987
        %v1002 = vunpack.c.l.b16 %v988
        %v1003 = vunpack.c.l.b16 %v989
        %v1004 = vunpack.c.l.b16 %v990
        %v1005 = vpack.c.b16 %v1002, %v1001
        %v1006 = vpack.c.b16 %v1004, %v1003
        %v1010 = vsel %vm845, %v996, 0
        %1012 = vmatprep.subr.bf16.mxu0 0
        %1013 = vmatpush1.bf16.msra.mxu0 0
        %1014 = vmatprep.subr.bf16.mxu0 0
        %1015 = vmatpush1.bf16.msra.mxu0 0
        %1016 = vmatprep.subr.bf16.mxu0 0
        %1017 = vmatpush1.bf16.msra.mxu0 0
        %1018 = vmatprep.subr.bf16.mxu0 0
        %1019 = vmatpush1.bf16.msra.mxu0 0
        %1020 = vmatprep.subr.bf16.mxu0 0
        %1021 = vmatpush1.bf16.msra.mxu0 0
        %1022 = vmatprep.subr.bf16.mxu0 0
        %1023 = vmatpush1.bf16.msra.mxu0 0
        %1024 = vmatprep.subr.bf16.mxu0 0
        %1025 = vmatpush1.bf16.msra.mxu0 %v1006
        %1026 = vmatprep.subr.bf16.mxu0 0
        %1027 = vmatpush1.bf16.msra.mxu0 %v1005
        %1028 = vmatprep.subr.bf16.mxu0 0
        %1029 = vmatpush2.bf16.msra.mxu0 0
        %1030 = vmatprep.subr.bf16.mxu0 0
        %1031 = vmatpush2.bf16.msra.mxu0 0
        %1032 = vmatprep.subr.bf16.mxu0 0
        %1033 = vmatpush2.bf16.msra.mxu0 0
        %1034 = vmatprep.subr.bf16.mxu0 0
        %1035 = vmatpush2.bf16.msra.mxu0 0
        %1036 = vmatprep.subr.bf16.mxu0 0
        %1037 = vmatpush2.bf16.msra.mxu0 0
        %1038 = vmatprep.subr.bf16.mxu0 0
        %1039 = vmatpush2.bf16.msra.mxu0 0
        %1040 = vmatprep.subr.bf16.mxu0 0
        %1041 = vmatpush2.bf16.msra.mxu0 0
        %1042 = vmatprep.subr.bf16.mxu0 0
        %1043 = vmatpush2.bf16.msra.mxu0 0
        %1044 = vmatprep.mubr.bf16.mxu0 0
        %1045 = vmatmul.mubr.bf16.gmra.mxu0 %v1010
        %v1046 = vpop.f32.mrf.mxu0
        %v1047 = vadd.f32 0.0, %v1046
        %v1048 = vpop.f32.mrf.mxu0
        %v1049 = vpop.f32.mrf.mxu0
        %v1050 = vadd.f32 0.0, %v1049
        %v1051 = vpop.f32.mrf.mxu0
        %1052 = vdwg.mxu0
        %v1053 = vadd.f32 %v980, %v1047
        %v1054 = vadd.f32 %v983, %v1050
        %s1055 = scalar_lea.vmem %s612, 48 [#allocation11]
        %v1056 = vld [vmem:[%s1055] sm:$0xf]
        %v1057 = vld [vmem:[%s1055 + $0x4] sm:$0xf]
        %v1058 = vld [vmem:[%s1055 + $0x8] sm:$0xf]
        %v1059 = vld [vmem:[%s1055 + $0xc] sm:$0xf]
        %vm1060 = vsmask.f32 6400
        %v1061 = vrot.slane %v864, 1
        %v1062 = vrot.slane %v866, 2
        %v1063 = vor.u32 %v1061, %v1062
        %v1064 = vshrl.u32 %v856, 16
        %v1066 = vrot.slane %v1064, 1
        %v1067 = vrot.slane %v871, 2
        %v1068 = vor.u32 %v1066, %v1067
        %v1069 = vsel %vm1060, %v1063, %v1068
        %v1074 = vunpack.c.l.b16 %v1056
        %v1075 = vunpack.c.l.b16 %v1057
        %v1076 = vunpack.c.l.b16 %v1058
        %v1077 = vunpack.c.l.b16 %v1059
        %v1078 = vpack.c.b16 %v1075, %v1074
        %v1079 = vpack.c.b16 %v1077, %v1076
        %v1083 = vsel %vm845, %v1069, 0
        %1085 = vmatprep.subr.bf16.mxu0 0
        %1086 = vmatpush1.bf16.msra.mxu0 0
        %1087 = vmatprep.subr.bf16.mxu0 0
        %1088 = vmatpush1.bf16.msra.mxu0 0
        %1089 = vmatprep.subr.bf16.mxu0 0
        %1090 = vmatpush1.bf16.msra.mxu0 0
        %1091 = vmatprep.subr.bf16.mxu0 0
        %1092 = vmatpush1.bf16.msra.mxu0 0
        %1093 = vmatprep.subr.bf16.mxu0 0
        %1094 = vmatpush1.bf16.msra.mxu0 0
        %1095 = vmatprep.subr.bf16.mxu0 0
        %1096 = vmatpush1.bf16.msra.mxu0 0
        %1097 = vmatprep.subr.bf16.mxu0 0
        %1098 = vmatpush1.bf16.msra.mxu0 %v1079
        %1099 = vmatprep.subr.bf16.mxu0 0
        %1100 = vmatpush1.bf16.msra.mxu0 %v1078
        %1101 = vmatprep.subr.bf16.mxu0 0
        %1102 = vmatpush2.bf16.msra.mxu0 0
        %1103 = vmatprep.subr.bf16.mxu0 0
        %1104 = vmatpush2.bf16.msra.mxu0 0
        %1105 = vmatprep.subr.bf16.mxu0 0
        %1106 = vmatpush2.bf16.msra.mxu0 0
        %1107 = vmatprep.subr.bf16.mxu0 0
        %1108 = vmatpush2.bf16.msra.mxu0 0
        %1109 = vmatprep.subr.bf16.mxu0 0
        %1110 = vmatpush2.bf16.msra.mxu0 0
        %1111 = vmatprep.subr.bf16.mxu0 0
        %1112 = vmatpush2.bf16.msra.mxu0 0
        %1113 = vmatprep.subr.bf16.mxu0 0
        %1114 = vmatpush2.bf16.msra.mxu0 0
        %1115 = vmatprep.subr.bf16.mxu0 0
        %1116 = vmatpush2.bf16.msra.mxu0 0
        %1117 = vmatprep.mubr.bf16.mxu0 0
        %1118 = vmatmul.mubr.bf16.gmra.mxu0 %v1083
        %v1119 = vpop.f32.mrf.mxu0
        %v1120 = vadd.f32 0.0, %v1119
        %v1121 = vpop.f32.mrf.mxu0
        %v1122 = vpop.f32.mrf.mxu0
        %v1123 = vadd.f32 0.0, %v1122
        %v1124 = vpop.f32.mrf.mxu0
        %1125 = vdwg.mxu0
        %v1126 = vadd.f32 %v1053, %v1120
        %v1127 = vadd.f32 %v1054, %v1123
        %s1128 = scalar_lea.vmem %s612, 64 [#allocation11]
        %v1129 = vld [vmem:[%s1128] sm:$0xf]
        %v1130 = vld [vmem:[%s1128 + $0x4] sm:$0xf]
        %v1131 = vld [vmem:[%s1128 + $0x8] sm:$0xf]
        %v1132 = vld [vmem:[%s1128 + $0xc] sm:$0xf]
        %vm1133 = vcmask 1045504
        %v1134 = vrot.slane %v851, 2
        %v1135 = vrot.slane %v856, 2
        %v1136 = vsel %vm1133, %v1134, %v1135
        %v1141 = vunpack.c.l.b16 %v1129
        %v1142 = vunpack.c.l.b16 %v1130
        %v1143 = vunpack.c.l.b16 %v1131
        %v1144 = vunpack.c.l.b16 %v1132
        %v1145 = vpack.c.b16 %v1142, %v1141
        %v1146 = vpack.c.b16 %v1144, %v1143
        %v1150 = vsel %vm845, %v1136, 0
        %1152 = vmatprep.subr.bf16.mxu0 0
        %1153 = vmatpush1.bf16.msra.mxu0 0
        %1154 = vmatprep.subr.bf16.mxu0 0
        %1155 = vmatpush1.bf16.msra.mxu0 0
        %1156 = vmatprep.subr.bf16.mxu0 0
        %1157 = vmatpush1.bf16.msra.mxu0 0
        %1158 = vmatprep.subr.bf16.mxu0 0
        %1159 = vmatpush1.bf16.msra.mxu0 0
        %1160 = vmatprep.subr.bf16.mxu0 0
        %1161 = vmatpush1.bf16.msra.mxu0 0
        %1162 = vmatprep.subr.bf16.mxu0 0
        %1163 = vmatpush1.bf16.msra.mxu0 0
        %1164 = vmatprep.subr.bf16.mxu0 0
        %1165 = vmatpush1.bf16.msra.mxu0 %v1146
        %1166 = vmatprep.subr.bf16.mxu0 0
        %1167 = vmatpush1.bf16.msra.mxu0 %v1145
        %1168 = vmatprep.subr.bf16.mxu0 0
        %1169 = vmatpush2.bf16.msra.mxu0 0
        %1170 = vmatprep.subr.bf16.mxu0 0
        %1171 = vmatpush2.bf16.msra.mxu0 0
        %1172 = vmatprep.subr.bf16.mxu0 0
        %1173 = vmatpush2.bf16.msra.mxu0 0
        %1174 = vmatprep.subr.bf16.mxu0 0
        %1175 = vmatpush2.bf16.msra.mxu0 0
        %1176 = vmatprep.subr.bf16.mxu0 0
        %1177 = vmatpush2.bf16.msra.mxu0 0
        %1178 = vmatprep.subr.bf16.mxu0 0
        %1179 = vmatpush2.bf16.msra.mxu0 0
        %1180 = vmatprep.subr.bf16.mxu0 0
        %1181 = vmatpush2.bf16.msra.mxu0 0
        %1182 = vmatprep.subr.bf16.mxu0 0
        %1183 = vmatpush2.bf16.msra.mxu0 0
        %1184 = vmatprep.mubr.bf16.mxu0 0
        %1185 = vmatmul.mubr.bf16.gmra.mxu0 %v1150
        %v1186 = vpop.f32.mrf.mxu0
        %v1187 = vadd.f32 0.0, %v1186
        %v1188 = vpop.f32.mrf.mxu0
        %v1189 = vpop.f32.mrf.mxu0
        %v1190 = vadd.f32 0.0, %v1189
        %v1191 = vpop.f32.mrf.mxu0
        %1192 = vdwg.mxu0
        %v1193 = vadd.f32 %v1126, %v1187
        %v1194 = vadd.f32 %v1127, %v1190
        %v1195 = vld [vmem:[%s717] sm:$0x1]
        %v1196 = vadd.f32 %v1195, %v844
        %v1198 = vlaneseq
        %v1199 = vshrl.u32 %v1198, 7
        %v1200 = vsub.s32 0, %v1199
        %v1201 = vrot.slane %v1196, %v1200
        %v1203 = vadd.f32 %v1193, %v1201
        %v1204 = vadd.f32 %v1194, %v1201
        %v1205 = vtanh.pop %v1203
        %v1206 = vtanh.pop %v1204
        %v1207 = vxor.u32 %v1203, 2147483648
        %v1208 = vxor.u32 %v1204, 2147483648
        %v1209 = vmul.f32 %v1207, 1.442695
        %v1210 = vpow.pop %v1209
        %v1211 = vmul.f32 %v1208, 1.442695
        %v1212 = vpow.pop %v1211
        %v1213 = vadd.f32 %v1210, 1.0
        %v1214 = vadd.f32 %v1212, 1.0
        %v1215 = vrcp.pop %v1213
        %v1216 = vmul.f32 1.0, %v1215
        %v1217 = vrcp.pop %v1214
        %v1218 = vmul.f32 1.0, %v1217
        %1221 = vrot.lane.b32.xlu0 %v1216, 96
        %v1222 = vpop.permute.xlu0 %1221
        %1223 = vrot.lane.b32.xlu0 %v1218, 96
        %v1224 = vpop.permute.xlu0 %1223
        %v1227 = vmul.f32 %v1205, %v1222
        %v1228 = vmul.f32 %v1206, %v1224
        %v1229 = vld [vmem:[%s722] sm:$0xff]
        %v1230 = vld [vmem:[%s722 + $0x8] sm:$0xff]
        %v1231 = vld [vmem:[%s722 + $0x10] sm:$0xff]
        %v1232 = vld [vmem:[%s722 + $0x18] sm:$0xff]
        %v1233 = vld [vmem:[%s725] sm:$0x1]
        %v1235 = vlaneseq
        %v1236 = vshrl.u32 %v1235, 7
        %v1237 = vsub.s32 0, %v1236
        %v1238 = vrot.slane %v1233, %v1237
        %v1241 = vsel %vm845, %v1227, 0
        %v1244 = vsel %vm845, %v1228, 0
        %1246 = vmatprep.subr.mxu0 0.0
        %1247 = vmatpush1.msra.mxu0 0.0
        %1248 = vmatprep.subr.mxu0 0.0
        %1249 = vmatpush1.msra.mxu0 0.0
        %1250 = vmatprep.subr.mxu0 0.0
        %1251 = vmatpush1.msra.mxu0 0.0
        %1252 = vmatprep.subr.mxu0 0.0
        %1253 = vmatpush1.msra.mxu0 0.0
        %1254 = vmatprep.subr.mxu0 0.0
        %1255 = vmatpush1.msra.mxu0 0.0
        %1256 = vmatprep.subr.mxu0 0.0
        %1257 = vmatpush1.msra.mxu0 0.0
        %1258 = vmatprep.subr.mxu0 0.0
        %1259 = vmatpush1.msra.mxu0 0.0
        %1260 = vmatprep.subr.mxu0 0.0
        %1261 = vmatpush1.msra.mxu0 0.0
        %1262 = vmatprep.subr.mxu0 0.0
        %1263 = vmatpush1.msra.mxu0 0.0
        %1264 = vmatprep.subr.mxu0 0.0
        %1265 = vmatpush1.msra.mxu0 0.0
        %1266 = vmatprep.subr.mxu0 0.0
        %1267 = vmatpush1.msra.mxu0 0.0
        %1268 = vmatprep.subr.mxu0 0.0
        %1269 = vmatpush1.msra.mxu0 0.0
        %1270 = vmatprep.subr.mxu0 0.0
        %1271 = vmatpush1.msra.mxu0 %v1232
        %1272 = vmatprep.subr.mxu0 0.0
        %1273 = vmatpush1.msra.mxu0 %v1231
        %1274 = vmatprep.subr.mxu0 0.0
        %1275 = vmatpush1.msra.mxu0 %v1230
        %1276 = vmatprep.subr.mxu0 0.0
        %1277 = vmatpush1.msra.mxu0 %v1229
        %1278 = vmatprep.subr.mxu0 0.0
        %1279 = vmatpush2.msra.mxu0 0.0
        %1280 = vmatprep.subr.mxu0 0.0
        %1281 = vmatpush2.msra.mxu0 0.0
        %1282 = vmatprep.subr.mxu0 0.0
        %1283 = vmatpush2.msra.mxu0 0.0
        %1284 = vmatprep.subr.mxu0 0.0
        %1285 = vmatpush2.msra.mxu0 0.0
        %1286 = vmatprep.subr.mxu0 0.0
        %1287 = vmatpush2.msra.mxu0 0.0
        %1288 = vmatprep.subr.mxu0 0.0
        %1289 = vmatpush2.msra.mxu0 0.0
        %1290 = vmatprep.subr.mxu0 0.0
        %1291 = vmatpush2.msra.mxu0 0.0
        %1292 = vmatprep.subr.mxu0 0.0
        %1293 = vmatpush2.msra.mxu0 0.0
        %1294 = vmatprep.subr.mxu0 0.0
        %1295 = vmatpush2.msra.mxu0 0.0
        %1296 = vmatprep.subr.mxu0 0.0
        %1297 = vmatpush2.msra.mxu0 0.0
        %1298 = vmatprep.subr.mxu0 0.0
        %1299 = vmatpush2.msra.mxu0 0.0
        %1300 = vmatprep.subr.mxu0 0.0
        %1301 = vmatpush2.msra.mxu0 0.0
        %1302 = vmatprep.subr.mxu0 0.0
        %1303 = vmatpush2.msra.mxu0 0.0
        %1304 = vmatprep.subr.mxu0 0.0
        %1305 = vmatpush2.msra.mxu0 0.0
        %1306 = vmatprep.subr.mxu0 0.0
        %1307 = vmatpush2.msra.mxu0 0.0
        %1308 = vmatprep.subr.mxu0 0.0
        %1309 = vmatpush2.msra.mxu0 0.0
        %1310 = vmatprep.mubr.f32.mxu0 0.0
        %1311 = vmatmul.mubr.f32.gmra.mxu0 %v1241
        %v1312 = vpop.f32.mrf.mxu0
        %v1313 = vadd.f32 %v1238, %v1312
        %v1314 = vpop.f32.mrf.mxu0
        %1315 = vmatprep.mubr.f32.mxu0 0.0
        %1316 = vmatmul.mubr.f32.gmra.mxu0 %v1244
        %v1317 = vpop.f32.mrf.mxu0
        %v1318 = vadd.f32 %v1238, %v1317
        %v1319 = vpop.f32.mrf.mxu0
        %1320 = vdwg.mxu0
        %v1321 = vadd.f32 %v842, %v1313
        %v1322 = vadd.f32 %v843, %v1318
        %v1323 = vmul.f32 %v1321, %v748
        %v1324 = vmul.f32 %v1322, %v753
        %v1325 = vadd.f32 %v1313, 0.0
        %v1326 = vadd.f32 %v1318, 0.0
        %1327 = vst.msk [vmem:[#allocation4 + $0x2] sm:$0xff] %vm845, %v1323
        %1328 = vst.msk [vmem:[#allocation4 + $0xa] sm:$0xff] %vm845, %v1324
        %v1329 = vld [vmem:[#allocation4] sm:$0xff]
        %v1330 = vld [vmem:[#allocation4 + $0x8] sm:$0xff]
        %v1331 = vld [vmem:[#allocation4 + $0x10] sm:$0xf]
        %v1332 = vpack.c.bf16 %v1330, %v1329
        %s1333 = scalar_lea.vmem %s612, 80 [#allocation11]
        %v1334 = vld [vmem:[%s1333] sm:$0xf]
        %v1335 = vld [vmem:[%s1333 + $0x4] sm:$0xf]
        %v1336 = vld [vmem:[%s1333 + $0x8] sm:$0xf]
        %v1337 = vld [vmem:[%s1333 + $0xc] sm:$0xf]
        %v1338 = vpack.c.bf16 %v1331, %v1331
        %s1339 = scalar_lea.vmem %s612, 96 [#allocation11]
        %v1340 = vld [vmem:[%s1339] sm:$0xf]
        %v1341 = vld [vmem:[%s1339 + $0x4] sm:$0xf]
        %v1342 = vld [vmem:[%s1339 + $0x8] sm:$0xf]
        %v1343 = vld [vmem:[%s1339 + $0xc] sm:$0xf]
        %v1345 = vshrl.u32 %v1332, 16
        %v1347 = vshll.u32 %v1332, 16
        %v1349 = vrot.slane %v1347, 1
        %v1350 = vor.u32 %v1345, %v1349
        %v1352 = vshll.u32 %v1338, 16
        %v1354 = vrot.slane %v1352, 1
        %v1355 = vsel %vm862, %v1350, %v1354
        %v1360 = vunpack.c.l.b16 %v1340
        %v1361 = vunpack.c.l.b16 %v1341
        %v1362 = vunpack.c.l.b16 %v1342
        %v1363 = vunpack.c.l.b16 %v1343
        %v1364 = vpack.c.b16 %v1361, %v1360
        %v1365 = vpack.c.b16 %v1363, %v1362
        %v1369 = vsel %vm845, %v1355, 0
        %1371 = vmatprep.subr.bf16.mxu0 0
        %1372 = vmatpush1.bf16.msra.mxu0 0
        %1373 = vmatprep.subr.bf16.mxu0 0
        %1374 = vmatpush1.bf16.msra.mxu0 0
        %1375 = vmatprep.subr.bf16.mxu0 0
        %1376 = vmatpush1.bf16.msra.mxu0 0
        %1377 = vmatprep.subr.bf16.mxu0 0
        %1378 = vmatpush1.bf16.msra.mxu0 0
        %1379 = vmatprep.subr.bf16.mxu0 0
        %1380 = vmatpush1.bf16.msra.mxu0 0
        %1381 = vmatprep.subr.bf16.mxu0 0
        %1382 = vmatpush1.bf16.msra.mxu0 0
        %1383 = vmatprep.subr.bf16.mxu0 0
        %1384 = vmatpush1.bf16.msra.mxu0 %v1365
        %1385 = vmatprep.subr.bf16.mxu0 0
        %1386 = vmatpush1.bf16.msra.mxu0 %v1364
        %1387 = vmatprep.subr.bf16.mxu0 0
        %1388 = vmatpush2.bf16.msra.mxu0 0
        %1389 = vmatprep.subr.bf16.mxu0 0
        %1390 = vmatpush2.bf16.msra.mxu0 0
        %1391 = vmatprep.subr.bf16.mxu0 0
        %1392 = vmatpush2.bf16.msra.mxu0 0
        %1393 = vmatprep.subr.bf16.mxu0 0
        %1394 = vmatpush2.bf16.msra.mxu0 0
        %1395 = vmatprep.subr.bf16.mxu0 0
        %1396 = vmatpush2.bf16.msra.mxu0 0
        %1397 = vmatprep.subr.bf16.mxu0 0
        %1398 = vmatpush2.bf16.msra.mxu0 0
        %1399 = vmatprep.subr.bf16.mxu0 0
        %1400 = vmatpush2.bf16.msra.mxu0 0
        %1401 = vmatprep.subr.bf16.mxu0 0
        %1402 = vmatpush2.bf16.msra.mxu0 0
        %1403 = vmatprep.mubr.bf16.mxu0 0
        %1404 = vmatmul.mubr.bf16.gmra.mxu0 %v1369
        %v1405 = vpop.f32.mrf.mxu0
        %v1406 = vadd.f32 0.0, %v1405
        %v1407 = vpop.f32.mrf.mxu0
        %v1408 = vpop.f32.mrf.mxu0
        %v1409 = vadd.f32 0.0, %v1408
        %v1410 = vpop.f32.mrf.mxu0
        %1411 = vdwg.mxu0
        %v1416 = vunpack.c.l.b16 %v1334
        %v1417 = vunpack.c.l.b16 %v1335
        %v1418 = vunpack.c.l.b16 %v1336
        %v1419 = vunpack.c.l.b16 %v1337
        %v1420 = vpack.c.b16 %v1417, %v1416
        %v1421 = vpack.c.b16 %v1419, %v1418
        %v1424 = vsel %vm845, %v1332, 0
        %1426 = vmatprep.subr.bf16.mxu0 0
        %1427 = vmatpush1.bf16.msra.mxu0 0
        %1428 = vmatprep.subr.bf16.mxu0 0
        %1429 = vmatpush1.bf16.msra.mxu0 0
        %1430 = vmatprep.subr.bf16.mxu0 0
        %1431 = vmatpush1.bf16.msra.mxu0 0
        %1432 = vmatprep.subr.bf16.mxu0 0
        %1433 = vmatpush1.bf16.msra.mxu0 0
        %1434 = vmatprep.subr.bf16.mxu0 0
        %1435 = vmatpush1.bf16.msra.mxu0 0
        %1436 = vmatprep.subr.bf16.mxu0 0
        %1437 = vmatpush1.bf16.msra.mxu0 0
        %1438 = vmatprep.subr.bf16.mxu0 0
        %1439 = vmatpush1.bf16.msra.mxu0 %v1421
        %1440 = vmatprep.subr.bf16.mxu0 0
        %1441 = vmatpush1.bf16.msra.mxu0 %v1420
        %1442 = vmatprep.subr.bf16.mxu0 0
        %1443 = vmatpush2.bf16.msra.mxu0 0
        %1444 = vmatprep.subr.bf16.mxu0 0
        %1445 = vmatpush2.bf16.msra.mxu0 0
        %1446 = vmatprep.subr.bf16.mxu0 0
        %1447 = vmatpush2.bf16.msra.mxu0 0
        %1448 = vmatprep.subr.bf16.mxu0 0
        %1449 = vmatpush2.bf16.msra.mxu0 0
        %1450 = vmatprep.subr.bf16.mxu0 0
        %1451 = vmatpush2.bf16.msra.mxu0 0
        %1452 = vmatprep.subr.bf16.mxu0 0
        %1453 = vmatpush2.bf16.msra.mxu0 0
        %1454 = vmatprep.subr.bf16.mxu0 0
        %1455 = vmatpush2.bf16.msra.mxu0 0
        %1456 = vmatprep.subr.bf16.mxu0 0
        %1457 = vmatpush2.bf16.msra.mxu0 0
        %1458 = vmatprep.mubr.bf16.mxu0 0
        %1459 = vmatmul.mubr.bf16.gmra.mxu0 %v1424
        %v1460 = vpop.f32.mrf.mxu0
        %v1461 = vadd.f32 %v1406, %v1460
        %v1462 = vpop.f32.mrf.mxu0
        %v1463 = vpop.f32.mrf.mxu0
        %v1464 = vadd.f32 %v1409, %v1463
        %v1465 = vpop.f32.mrf.mxu0
        %1466 = vdwg.mxu0
        %s1467 = scalar_lea.vmem %s612, 112 [#allocation11]
        %v1468 = vld [vmem:[%s1467] sm:$0xf]
        %v1469 = vld [vmem:[%s1467 + $0x4] sm:$0xf]
        %v1470 = vld [vmem:[%s1467 + $0x8] sm:$0xf]
        %v1471 = vld [vmem:[%s1467 + $0xc] sm:$0xf]
        %v1474 = vrot.slane %v1332, 1
        %v1475 = vrot.slane %v1338, 1
        %v1476 = vsel %vm993, %v1474, %v1475
        %v1481 = vunpack.c.l.b16 %v1468
        %v1482 = vunpack.c.l.b16 %v1469
        %v1483 = vunpack.c.l.b16 %v1470
        %v1484 = vunpack.c.l.b16 %v1471
        %v1485 = vpack.c.b16 %v1482, %v1481
        %v1486 = vpack.c.b16 %v1484, %v1483
        %v1490 = vsel %vm845, %v1476, 0
        %1492 = vmatprep.subr.bf16.mxu0 0
        %1493 = vmatpush1.bf16.msra.mxu0 0
        %1494 = vmatprep.subr.bf16.mxu0 0
        %1495 = vmatpush1.bf16.msra.mxu0 0
        %1496 = vmatprep.subr.bf16.mxu0 0
        %1497 = vmatpush1.bf16.msra.mxu0 0
        %1498 = vmatprep.subr.bf16.mxu0 0
        %1499 = vmatpush1.bf16.msra.mxu0 0
        %1500 = vmatprep.subr.bf16.mxu0 0
        %1501 = vmatpush1.bf16.msra.mxu0 0
        %1502 = vmatprep.subr.bf16.mxu0 0
        %1503 = vmatpush1.bf16.msra.mxu0 0
        %1504 = vmatprep.subr.bf16.mxu0 0
        %1505 = vmatpush1.bf16.msra.mxu0 %v1486
        %1506 = vmatprep.subr.bf16.mxu0 0
        %1507 = vmatpush1.bf16.msra.mxu0 %v1485
        %1508 = vmatprep.subr.bf16.mxu0 0
        %1509 = vmatpush2.bf16.msra.mxu0 0
        %1510 = vmatprep.subr.bf16.mxu0 0
        %1511 = vmatpush2.bf16.msra.mxu0 0
        %1512 = vmatprep.subr.bf16.mxu0 0
        %1513 = vmatpush2.bf16.msra.mxu0 0
        %1514 = vmatprep.subr.bf16.mxu0 0
        %1515 = vmatpush2.bf16.msra.mxu0 0
        %1516 = vmatprep.subr.bf16.mxu0 0
        %1517 = vmatpush2.bf16.msra.mxu0 0
        %1518 = vmatprep.subr.bf16.mxu0 0
        %1519 = vmatpush2.bf16.msra.mxu0 0
        %1520 = vmatprep.subr.bf16.mxu0 0
        %1521 = vmatpush2.bf16.msra.mxu0 0
        %1522 = vmatprep.subr.bf16.mxu0 0
        %1523 = vmatpush2.bf16.msra.mxu0 0
        %1524 = vmatprep.mubr.bf16.mxu0 0
        %1525 = vmatmul.mubr.bf16.gmra.mxu0 %v1490
        %v1526 = vpop.f32.mrf.mxu0
        %v1527 = vadd.f32 0.0, %v1526
        %v1528 = vpop.f32.mrf.mxu0
        %v1529 = vpop.f32.mrf.mxu0
        %v1530 = vadd.f32 0.0, %v1529
        %v1531 = vpop.f32.mrf.mxu0
        %1532 = vdwg.mxu0
        %v1533 = vadd.f32 %v1461, %v1527
        %v1534 = vadd.f32 %v1464, %v1530
        %s1535 = scalar_lea.vmem %s612, 128 [#allocation11]
        %v1536 = vld [vmem:[%s1535] sm:$0xf]
        %v1537 = vld [vmem:[%s1535 + $0x4] sm:$0xf]
        %v1538 = vld [vmem:[%s1535 + $0x8] sm:$0xf]
        %v1539 = vld [vmem:[%s1535 + $0xc] sm:$0xf]
        %v1540 = vrot.slane %v1345, 1
        %v1541 = vrot.slane %v1347, 2
        %v1542 = vor.u32 %v1540, %v1541
        %v1543 = vshrl.u32 %v1338, 16
        %v1545 = vrot.slane %v1543, 1
        %v1546 = vrot.slane %v1352, 2
        %v1547 = vor.u32 %v1545, %v1546
        %v1548 = vsel %vm1060, %v1542, %v1547
        %v1553 = vunpack.c.l.b16 %v1536
        %v1554 = vunpack.c.l.b16 %v1537
        %v1555 = vunpack.c.l.b16 %v1538
        %v1556 = vunpack.c.l.b16 %v1539
        %v1557 = vpack.c.b16 %v1554, %v1553
        %v1558 = vpack.c.b16 %v1556, %v1555
        %v1562 = vsel %vm845, %v1548, 0
        %1564 = vmatprep.subr.bf16.mxu0 0
        %1565 = vmatpush1.bf16.msra.mxu0 0
        %1566 = vmatprep.subr.bf16.mxu0 0
        %1567 = vmatpush1.bf16.msra.mxu0 0
        %1568 = vmatprep.subr.bf16.mxu0 0
        %1569 = vmatpush1.bf16.msra.mxu0 0
        %1570 = vmatprep.subr.bf16.mxu0 0
        %1571 = vmatpush1.bf16.msra.mxu0 0
        %1572 = vmatprep.subr.bf16.mxu0 0
        %1573 = vmatpush1.bf16.msra.mxu0 0
        %1574 = vmatprep.subr.bf16.mxu0 0
        %1575 = vmatpush1.bf16.msra.mxu0 0
        %1576 = vmatprep.subr.bf16.mxu0 0
        %1577 = vmatpush1.bf16.msra.mxu0 %v1558
        %1578 = vmatprep.subr.bf16.mxu0 0
        %1579 = vmatpush1.bf16.msra.mxu0 %v1557
        %1580 = vmatprep.subr.bf16.mxu0 0
        %1581 = vmatpush2.bf16.msra.mxu0 0
        %1582 = vmatprep.subr.bf16.mxu0 0
        %1583 = vmatpush2.bf16.msra.mxu0 0
        %1584 = vmatprep.subr.bf16.mxu0 0
        %1585 = vmatpush2.bf16.msra.mxu0 0
        %1586 = vmatprep.subr.bf16.mxu0 0
        %1587 = vmatpush2.bf16.msra.mxu0 0
        %1588 = vmatprep.subr.bf16.mxu0 0
        %1589 = vmatpush2.bf16.msra.mxu0 0
        %1590 = vmatprep.subr.bf16.mxu0 0
        %1591 = vmatpush2.bf16.msra.mxu0 0
        %1592 = vmatprep.subr.bf16.mxu0 0
        %1593 = vmatpush2.bf16.msra.mxu0 0
        %1594 = vmatprep.subr.bf16.mxu0 0
        %1595 = vmatpush2.bf16.msra.mxu0 0
        %1596 = vmatprep.mubr.bf16.mxu0 0
        %1597 = vmatmul.mubr.bf16.gmra.mxu0 %v1562
        %v1598 = vpop.f32.mrf.mxu0
        %v1599 = vadd.f32 0.0, %v1598
        %v1600 = vpop.f32.mrf.mxu0
        %v1601 = vpop.f32.mrf.mxu0
        %v1602 = vadd.f32 0.0, %v1601
        %v1603 = vpop.f32.mrf.mxu0
        %1604 = vdwg.mxu0
        %v1605 = vadd.f32 %v1533, %v1599
        %v1606 = vadd.f32 %v1534, %v1602
        %s1607 = scalar_lea.vmem %s612, 144 [#allocation11]
        %v1608 = vld [vmem:[%s1607] sm:$0xf]
        %v1609 = vld [vmem:[%s1607 + $0x4] sm:$0xf]
        %v1610 = vld [vmem:[%s1607 + $0x8] sm:$0xf]
        %v1611 = vld [vmem:[%s1607 + $0xc] sm:$0xf]
        %v1612 = vrot.slane %v1332, 2
        %v1613 = vrot.slane %v1338, 2
        %v1614 = vsel %vm1133, %v1612, %v1613
        %v1619 = vunpack.c.l.b16 %v1608
        %v1620 = vunpack.c.l.b16 %v1609
        %v1621 = vunpack.c.l.b16 %v1610
        %v1622 = vunpack.c.l.b16 %v1611
        %v1623 = vpack.c.b16 %v1620, %v1619
        %v1624 = vpack.c.b16 %v1622, %v1621
        %v1628 = vsel %vm845, %v1614, 0
        %1630 = vmatprep.subr.bf16.mxu0 0
        %1631 = vmatpush1.bf16.msra.mxu0 0
        %1632 = vmatprep.subr.bf16.mxu0 0
        %1633 = vmatpush1.bf16.msra.mxu0 0
        %1634 = vmatprep.subr.bf16.mxu0 0
        %1635 = vmatpush1.bf16.msra.mxu0 0
        %1636 = vmatprep.subr.bf16.mxu0 0
        %1637 = vmatpush1.bf16.msra.mxu0 0
        %1638 = vmatprep.subr.bf16.mxu0 0
        %1639 = vmatpush1.bf16.msra.mxu0 0
        %1640 = vmatprep.subr.bf16.mxu0 0
        %1641 = vmatpush1.bf16.msra.mxu0 0
        %1642 = vmatprep.subr.bf16.mxu0 0
        %1643 = vmatpush1.bf16.msra.mxu0 %v1624
        %1644 = vmatprep.subr.bf16.mxu0 0
        %1645 = vmatpush1.bf16.msra.mxu0 %v1623
        %1646 = vmatprep.subr.bf16.mxu0 0
        %1647 = vmatpush2.bf16.msra.mxu0 0
        %1648 = vmatprep.subr.bf16.mxu0 0
        %1649 = vmatpush2.bf16.msra.mxu0 0
        %1650 = vmatprep.subr.bf16.mxu0 0
        %1651 = vmatpush2.bf16.msra.mxu0 0
        %1652 = vmatprep.subr.bf16.mxu0 0
        %1653 = vmatpush2.bf16.msra.mxu0 0
        %1654 = vmatprep.subr.bf16.mxu0 0
        %1655 = vmatpush2.bf16.msra.mxu0 0
        %1656 = vmatprep.subr.bf16.mxu0 0
        %1657 = vmatpush2.bf16.msra.mxu0 0
        %1658 = vmatprep.subr.bf16.mxu0 0
        %1659 = vmatpush2.bf16.msra.mxu0 0
        %1660 = vmatprep.subr.bf16.mxu0 0
        %1661 = vmatpush2.bf16.msra.mxu0 0
        %1662 = vmatprep.mubr.bf16.mxu0 0
        %1663 = vmatmul.mubr.bf16.gmra.mxu0 %v1628
        %v1664 = vpop.f32.mrf.mxu0
        %v1665 = vadd.f32 0.0, %v1664
        %v1666 = vpop.f32.mrf.mxu0
        %v1667 = vpop.f32.mrf.mxu0
        %v1668 = vadd.f32 0.0, %v1667
        %v1669 = vpop.f32.mrf.mxu0
        %1670 = vdwg.mxu0
        %v1671 = vadd.f32 %v1605, %v1665
        %v1672 = vadd.f32 %v1606, %v1668
        %s1673 = scalar_lea.vmem %s717, 1
        %v1674 = vld [vmem:[%s1673] sm:$0x1]
        %v1677 = vunpack.c.l.s4 1966171168
        %v1678 = vunpack.c.0.s8 %v1677
        %v1679 = vlaneseq
        %v1680 = vshrl.u32 %v1679, 7
        %v1681 = vsub.s32 %v1678, %v1680
        %v1682 = vrot.slane %v844, %v1681
        %v1683 = vcombine.high %v1682, %v1682
        %v1685 = vunpack.c.l.s4 1966171168
        %v1686 = vunpack.c.0.s8 %v1685
        %v1687 = vlaneseq
        %v1688 = vshrl.u32 %v1687, 7
        %v1689 = vsub.s32 %v1686, %v1688
        %v1690 = vrot.slane %v1683, %v1689
        %v1692 = vadd.f32 %v1674, %v1690
        %v1694 = vlaneseq
        %v1695 = vshrl.u32 %v1694, 7
        %v1696 = vsub.s32 0, %v1695
        %v1697 = vrot.slane %v1692, %v1696
        %v1699 = vadd.f32 %v1671, %v1697
        %v1700 = vadd.f32 %v1672, %v1697
        %v1701 = vtanh.pop %v1699
        %v1702 = vtanh.pop %v1700
        %v1703 = vxor.u32 %v1699, 2147483648
        %v1704 = vxor.u32 %v1700, 2147483648
        %v1705 = vmul.f32 %v1703, 1.442695
        %v1706 = vpow.pop %v1705
        %v1707 = vmul.f32 %v1704, 1.442695
        %v1708 = vpow.pop %v1707
        %v1709 = vadd.f32 %v1706, 1.0
        %v1710 = vadd.f32 %v1708, 1.0
        %v1711 = vrcp.pop %v1709
        %v1712 = vmul.f32 1.0, %v1711
        %v1713 = vrcp.pop %v1710
        %v1714 = vmul.f32 1.0, %v1713
        %1717 = vrot.lane.b32.xlu0 %v1712, 96
        %v1718 = vpop.permute.xlu0 %1717
        %1719 = vrot.lane.b32.xlu0 %v1714, 96
        %v1720 = vpop.permute.xlu0 %1719
        %v1723 = vmul.f32 %v1701, %v1718
        %v1724 = vmul.f32 %v1702, %v1720
        %v1725 = vld [vmem:[%s730] sm:$0xff]
        %v1726 = vld [vmem:[%s730 + $0x8] sm:$0xff]
        %v1727 = vld [vmem:[%s730 + $0x10] sm:$0xff]
        %v1728 = vld [vmem:[%s730 + $0x18] sm:$0xff]
        %v1729 = vld [vmem:[%s733] sm:$0x1]
        %v1731 = vlaneseq
        %v1732 = vshrl.u32 %v1731, 7
        %v1733 = vsub.s32 0, %v1732
        %v1734 = vrot.slane %v1729, %v1733
        %v1737 = vsel %vm845, %v1723, 0
        %v1740 = vsel %vm845, %v1724, 0
        %1742 = vmatprep.subr.mxu0 0.0
        %1743 = vmatpush1.msra.mxu0 0.0
        %1744 = vmatprep.subr.mxu0 0.0
        %1745 = vmatpush1.msra.mxu0 0.0
        %1746 = vmatprep.subr.mxu0 0.0
        %1747 = vmatpush1.msra.mxu0 0.0
        %1748 = vmatprep.subr.mxu0 0.0
        %1749 = vmatpush1.msra.mxu0 0.0
        %1750 = vmatprep.subr.mxu0 0.0
        %1751 = vmatpush1.msra.mxu0 0.0
        %1752 = vmatprep.subr.mxu0 0.0
        %1753 = vmatpush1.msra.mxu0 0.0
        %1754 = vmatprep.subr.mxu0 0.0
        %1755 = vmatpush1.msra.mxu0 0.0
        %1756 = vmatprep.subr.mxu0 0.0
        %1757 = vmatpush1.msra.mxu0 0.0
        %1758 = vmatprep.subr.mxu0 0.0
        %1759 = vmatpush1.msra.mxu0 0.0
        %1760 = vmatprep.subr.mxu0 0.0
        %1761 = vmatpush1.msra.mxu0 0.0
        %1762 = vmatprep.subr.mxu0 0.0
        %1763 = vmatpush1.msra.mxu0 0.0
        %1764 = vmatprep.subr.mxu0 0.0
        %1765 = vmatpush1.msra.mxu0 0.0
        %1766 = vmatprep.subr.mxu0 0.0
        %1767 = vmatpush1.msra.mxu0 %v1728
        %1768 = vmatprep.subr.mxu0 0.0
        %1769 = vmatpush1.msra.mxu0 %v1727
        %1770 = vmatprep.subr.mxu0 0.0
        %1771 = vmatpush1.msra.mxu0 %v1726
        %1772 = vmatprep.subr.mxu0 0.0
        %1773 = vmatpush1.msra.mxu0 %v1725
        %1774 = vmatprep.subr.mxu0 0.0
        %1775 = vmatpush2.msra.mxu0 0.0
        %1776 = vmatprep.subr.mxu0 0.0
        %1777 = vmatpush2.msra.mxu0 0.0
        %1778 = vmatprep.subr.mxu0 0.0
        %1779 = vmatpush2.msra.mxu0 0.0
        %1780 = vmatprep.subr.mxu0 0.0
        %1781 = vmatpush2.msra.mxu0 0.0
        %1782 = vmatprep.subr.mxu0 0.0
        %1783 = vmatpush2.msra.mxu0 0.0
        %1784 = vmatprep.subr.mxu0 0.0
        %1785 = vmatpush2.msra.mxu0 0.0
        %1786 = vmatprep.subr.mxu0 0.0
        %1787 = vmatpush2.msra.mxu0 0.0
        %1788 = vmatprep.subr.mxu0 0.0
        %1789 = vmatpush2.msra.mxu0 0.0
        %1790 = vmatprep.subr.mxu0 0.0
        %1791 = vmatpush2.msra.mxu0 0.0
        %1792 = vmatprep.subr.mxu0 0.0
        %1793 = vmatpush2.msra.mxu0 0.0
        %1794 = vmatprep.subr.mxu0 0.0
        %1795 = vmatpush2.msra.mxu0 0.0
        %1796 = vmatprep.subr.mxu0 0.0
        %1797 = vmatpush2.msra.mxu0 0.0
        %1798 = vmatprep.subr.mxu0 0.0
        %1799 = vmatpush2.msra.mxu0 0.0
        %1800 = vmatprep.subr.mxu0 0.0
        %1801 = vmatpush2.msra.mxu0 0.0
        %1802 = vmatprep.subr.mxu0 0.0
        %1803 = vmatpush2.msra.mxu0 0.0
        %1804 = vmatprep.subr.mxu0 0.0
        %1805 = vmatpush2.msra.mxu0 0.0
        %1806 = vmatprep.mubr.f32.mxu0 0.0
        %1807 = vmatmul.mubr.f32.gmra.mxu0 %v1737
        %v1808 = vpop.f32.mrf.mxu0
        %v1809 = vadd.f32 %v1734, %v1808
        %v1810 = vpop.f32.mrf.mxu0
        %1811 = vmatprep.mubr.f32.mxu0 0.0
        %1812 = vmatmul.mubr.f32.gmra.mxu0 %v1740
        %v1813 = vpop.f32.mrf.mxu0
        %v1814 = vadd.f32 %v1734, %v1813
        %v1815 = vpop.f32.mrf.mxu0
        %1816 = vdwg.mxu0
        %1819 = vrot.lane.b32.xlu0 %v1809, 32
        %v1820 = vpop.permute.xlu0 %1819
        %1821 = vrot.lane.b32.xlu0 %v1814, 32
        %v1822 = vpop.permute.xlu0 %1821
        %v1825 = vadd.f32 %v1325, %v1820
        %v1826 = vadd.f32 %v1326, %v1822
        %v1827 = vld [vmem:[%s738] sm:$0xff]
        %v1828 = vld [vmem:[%s738 + $0x8] sm:$0xff]
        %v1829 = vld [vmem:[%s738 + $0x10] sm:$0xff]
        %v1830 = vld [vmem:[%s738 + $0x18] sm:$0xff]
        %v1831 = vld [vmem:[%s741] sm:$0x1]
        %v1833 = vlaneseq
        %v1834 = vshrl.u32 %v1833, 7
        %v1835 = vsub.s32 0, %v1834
        %v1836 = vrot.slane %v1831, %v1835
        %1840 = vrot.lane.b32.xlu0 %v1825, 96
        %v1841 = vpop.permute.xlu0 %1840
        %1842 = vrot.lane.b32.xlu0 %v1826, 96
        %v1843 = vpop.permute.xlu0 %1842
        %v1844 = vsel %vm845, %v1841, 0
        %v1846 = vsel %vm845, %v1843, 0
        %1848 = vmatprep.subr.mxu0 0.0
        %1849 = vmatpush1.msra.mxu0 0.0
        %1850 = vmatprep.subr.mxu0 0.0
        %1851 = vmatpush1.msra.mxu0 0.0
        %1852 = vmatprep.subr.mxu0 0.0
        %1853 = vmatpush1.msra.mxu0 0.0
        %1854 = vmatprep.subr.mxu0 0.0
        %1855 = vmatpush1.msra.mxu0 0.0
        %1856 = vmatprep.subr.mxu0 0.0
        %1857 = vmatpush1.msra.mxu0 0.0
        %1858 = vmatprep.subr.mxu0 0.0
        %1859 = vmatpush1.msra.mxu0 0.0
        %1860 = vmatprep.subr.mxu0 0.0
        %1861 = vmatpush1.msra.mxu0 0.0
        %1862 = vmatprep.subr.mxu0 0.0
        %1863 = vmatpush1.msra.mxu0 0.0
        %1864 = vmatprep.subr.mxu0 0.0
        %1865 = vmatpush1.msra.mxu0 0.0
        %1866 = vmatprep.subr.mxu0 0.0
        %1867 = vmatpush1.msra.mxu0 0.0
        %1868 = vmatprep.subr.mxu0 0.0
        %1869 = vmatpush1.msra.mxu0 0.0
        %1870 = vmatprep.subr.mxu0 0.0
        %1871 = vmatpush1.msra.mxu0 0.0
        %1872 = vmatprep.subr.mxu0 0.0
        %1873 = vmatpush1.msra.mxu0 %v1830
        %1874 = vmatprep.subr.mxu0 0.0
        %1875 = vmatpush1.msra.mxu0 %v1829
        %1876 = vmatprep.subr.mxu0 0.0
        %1877 = vmatpush1.msra.mxu0 %v1828
        %1878 = vmatprep.subr.mxu0 0.0
        %1879 = vmatpush1.msra.mxu0 %v1827
        %1880 = vmatprep.subr.mxu0 0.0
        %1881 = vmatpush2.msra.mxu0 0.0
        %1882 = vmatprep.subr.mxu0 0.0
        %1883 = vmatpush2.msra.mxu0 0.0
        %1884 = vmatprep.subr.mxu0 0.0
        %1885 = vmatpush2.msra.mxu0 0.0
        %1886 = vmatprep.subr.mxu0 0.0
        %1887 = vmatpush2.msra.mxu0 0.0
        %1888 = vmatprep.subr.mxu0 0.0
        %1889 = vmatpush2.msra.mxu0 0.0
        %1890 = vmatprep.subr.mxu0 0.0
        %1891 = vmatpush2.msra.mxu0 0.0
        %1892 = vmatprep.subr.mxu0 0.0
        %1893 = vmatpush2.msra.mxu0 0.0
        %1894 = vmatprep.subr.mxu0 0.0
        %1895 = vmatpush2.msra.mxu0 0.0
        %1896 = vmatprep.subr.mxu0 0.0
        %1897 = vmatpush2.msra.mxu0 0.0
        %1898 = vmatprep.subr.mxu0 0.0
        %1899 = vmatpush2.msra.mxu0 0.0
        %1900 = vmatprep.subr.mxu0 0.0
        %1901 = vmatpush2.msra.mxu0 0.0
        %1902 = vmatprep.subr.mxu0 0.0
        %1903 = vmatpush2.msra.mxu0 0.0
        %1904 = vmatprep.subr.mxu0 0.0
        %1905 = vmatpush2.msra.mxu0 0.0
        %1906 = vmatprep.subr.mxu0 0.0
        %1907 = vmatpush2.msra.mxu0 0.0
        %1908 = vmatprep.subr.mxu0 0.0
        %1909 = vmatpush2.msra.mxu0 0.0
        %1910 = vmatprep.subr.mxu0 0.0
        %1911 = vmatpush2.msra.mxu0 0.0
        %1912 = vmatprep.mubr.f32.mxu0 0.0
        %1913 = vmatmul.mubr.f32.gmra.mxu0 %v1844
        %v1914 = vpop.f32.mrf.mxu0
        %v1915 = vadd.f32 %v1836, %v1914
        %v1916 = vpop.f32.mrf.mxu0
        %1917 = vmatprep.mubr.f32.mxu0 0.0
        %1918 = vmatmul.mubr.f32.gmra.mxu0 %v1846
        %v1919 = vpop.f32.mrf.mxu0
        %v1920 = vadd.f32 %v1836, %v1919
        %v1921 = vpop.f32.mrf.mxu0
        %1922 = vdwg.mxu0
        %v1923 = vmul.f32 %v1915, %v748
        %v1924 = vmul.f32 %v1920, %v753
        %v1925 = vmul.f32 %v779, %v748
        %v1926 = vmul.f32 %v780, %v753
        %v1927 = vadd.f32 %v1923, %v1925
        %v1928 = vadd.f32 %v1924, %v1926
        %1929 = vst.msk [vmem:[#allocation3] sm:$0xff] %vm797, %v777
        %1930 = vst.msk [vmem:[#allocation3 + $0x8] sm:$0xff] %vm797, %v778
        %1931 = vst.msk [vmem:[#allocation2] sm:$0xff] %vm797, %v1927
        %1932 = vst.msk [vmem:[#allocation2 + $0x8] sm:$0xff] %vm797, %v1928
        %p1933 = scmp.eq.s32.totalorder %s41, 1
        // Predicated region
        $region93: #{tpu_custom_call.1} parent=71 // pred_check
          %p1934 = pneg %p1933
        $region94: #{tpu_custom_call.1} parent=71 // pred_check_branch
          %1936 = sbr.rel (%p1934) target = $region96
        $region95: #{tpu_custom_call.1} parent=71 // pred_region
          %1939 = vrot.lane.b32.xlu0 %v777, 16
          %v1940 = vpop.permute.xlu0 %1939
          %1941 = vrot.lane.b32.xlu0 %v778, 16
          %v1942 = vpop.permute.xlu0 %1941
          %v1945 = vsel %vm797, %v1927, %v1940
          %v1946 = vsel %vm797, %v1928, %v1942
          %1947 = vst.msk [vmem:[%s705] sm:$0xff] %vm845, %v1945
          %1948 = vst.msk [vmem:[%s705 + $0x8] sm:$0xff] %vm845, %v1946
        $region96: #{tpu_custom_call.1} parent=71 // pred_fallthru
          _
        %s1949 = sand.u32 %s396, 1
        %s1950 = scalar_lea.sflag [#allocation7], %s1949
        %s1951 = sand.u32 %s396, 1
        %s1952 = smul.addr %s1951, 16
        %s1953 = scalar_lea.vmem [#allocation13], %s1952
        // Predicated region
        $region97: #{tpu_custom_call.1} parent=71 // pred_check
          %p1954 = pneg %p406
        $region98: #{tpu_custom_call.1} parent=71 // pred_check_branch
          %1956 = sbr.rel (%p1954) target = $region100
        $region99: #{tpu_custom_call.1} parent=71 // pred_region
          %s1958 = ssub.s32 256, 256
          %1959 = vsyncadd %s1950, %s1958
          %s1960 = smul.addr %s40, 2
          %s1961 = smul.addr %s1960, 128
          %s1962 = scalar_lea.hbm %s13, %s1961
          %s1963 = sshll.u32 %s1953, 4
          %s1964 = int_to_ptr.vmem [resolvable:$true] %s1963
          %1969 = dma.vmem_to_hbm [thread:$0]  %s1964, 256, %s1962, %s1950, 128, 128, 8
        $region100: #{tpu_custom_call.1} parent=71 // pred_fallthru
          _
      $region72: #{tpu_custom_call.1} parent=5 // pred_fallthru
        _
      %p1970 = scmp.le.s32.totalorder 2, %s31
      // Predicated region
      $region101: #{tpu_custom_call.1} parent=5 // pred_check
        %p1971 = pneg %p1970
      $region102: #{tpu_custom_call.1} parent=5 // pred_check_branch
        %1973 = sbr.rel (%p1971) target = $region104
      $region103: #{tpu_custom_call.1} parent=5 // pred_region
        %s1974 = ssub.s32 %s31, 2
        // Predicated region
        $region105: #{tpu_custom_call.1} parent=103 // pred_check
          %p1975 = pneg %p412
        $region106: #{tpu_custom_call.1} parent=103 // pred_check_branch
          %1977 = sbr.rel (%p1975) target = $region108
        $region107: #{tpu_custom_call.1} parent=103 // pred_region
          %s1978 = sand.u32 %s397, 1
          %s1979 = scalar_lea.sflag [#allocation7], %s1978
          %s1980 = sand.u32 %s397, 1
          %s1981 = smul.addr %s1980, 16
          %s1982 = scalar_lea.vmem [#allocation13], %s1981
          %1983 = dma.done %s1979, 256
        $region108: #{tpu_custom_call.1} parent=103 // pred_fallthru
          _
      $region104: #{tpu_custom_call.1} parent=5 // pred_fallthru
        _
    $region6: #{tpu_custom_call.1} parent=1 // loop_footer
      %s35 = sadd.s32 1, %s31
    $region7: #{tpu_custom_call.1} parent=1 // loop_footer_branch
      %30 = sbr.rel target = $region3
    $region8: #{tpu_custom_call.1} parent=1 // loop_exit
      _
    %1984 = vsyncpa [#allocation6], 1
    %s1985 = scalar_lea.sflag [#allocation6], 1
    %1986 = vsyncpa %s1985, 1
    %1987 = vsyncpa [#allocation9], 1
    %s1988 = scalar_lea.sflag [#allocation9], 1
    %1989 = vsyncpa %s1988, 1
    %1990 = vsyncpa [#allocation12], 1
    %s1991 = scalar_lea.sflag [#allocation12], 1
    %1992 = vsyncpa %s1991, 1
    %1993 = vsyncpa [#allocation7], 1
    %s1994 = scalar_lea.sflag [#allocation7], 1
    %1995 = vsyncpa %s1994, 1

</llo_original>
